<compile_context>
chip_gen: v6e
topology: v6e:2x2x1
jax: 0.10.0
libtpu: 0.0.40
codegen_flags: <defaults>
</compile_context>

<pallas_src>
import functools
import math

import jax
import jax.numpy as jnp
from jax import lax
from jax.experimental import pallas as pl
from jax.experimental.pallas import tpu as pltpu

SHRINK_THRES = 0.0025
HSR_EPS = 1e-12       # epsilon of hard_shrink_relu
L1_EPS = 1e-12        # F.normalize default eps (clamp_min)


def _mem_kernel(x_ref, w_ref, y_ref, att_ref, *, approx):
    x = x_ref[...]                                   # (tm, fea_dim), native dtype
    w = w_ref[...]                                   # (mem_dim, fea_dim), native dtype

    # att_weight = F.linear(x, W) = x @ W^T  -- NT-form dot_general, f32 accumulation.
    logits = lax.dot_general(
        x, w,
        dimension_numbers=(((1,), (1,)), ((), ())),
        preferred_element_type=jnp.float32)          # (tm, mem_dim) f32

    # softmax over the memory dimension.
    m = jnp.max(logits, axis=-1, keepdims=True)
    e = jnp.exp(logits - m)
    att = e * pl.reciprocal(jnp.sum(e, axis=-1, keepdims=True), approx=approx)

    # hard_shrink_relu: relu(a - l) * a / (|a - l| + eps)
    #   == where(a - l > 0, (a - l) * a / ((a - l) + eps), 0)   (FP-identical)
    shifted = att - SHRINK_THRES
    if approx:
        att = jnp.where(
            shifted > 0.0,
            att * shifted * pl.reciprocal(shifted + HSR_EPS, approx=True),
            0.0)
    else:
        att = jnp.where(shifted > 0.0, (shifted * att) / (shifted + HSR_EPS), 0.0)

    # F.normalize(p=1, dim=1): att >= 0 after the shrink, so sum == sum(|.|).
    l1 = jnp.sum(att, axis=-1, keepdims=True)
    att = att * pl.reciprocal(jnp.maximum(l1, L1_EPS), approx=approx)

    # output = F.linear(att, W^T) = att @ W  -- feed MXU in weight dtype.
    y = lax.dot_general(
        att.astype(w.dtype), w,
        dimension_numbers=(((1,), (0,)), ((), ())),
        preferred_element_type=jnp.float32)          # (tm, fea_dim) f32

    y_ref[...] = y.astype(y_ref.dtype)
    att_ref[...] = att.astype(att_ref.dtype)
    # TODO(synk): fea_dim/mem_dim < 128 leave the output stores masked
    # (vst.msk); a lane-dense (tm*fea//128, 128) output aliasing could remove
    # that but needs an in-kernel relayout whose cost must be measured first.


def _vmem_capacity_bytes():
    """Physical VMEM of the current chip; conservative v7x default on failure."""
    try:
        return int(pltpu.get_tpu_info().vmem_capacity_bytes)
    except Exception:
        return 64 * 1024 * 1024


def _vmem_needed_bytes(tile_m, fea_dim, mem_dim, io_bytes, w_bytes):
    weight_vmem = 2 * mem_dim * fea_dim * w_bytes                   # W, double-buffered
    io_vmem = 2 * tile_m * (2 * fea_dim + mem_dim) * io_bytes       # x, y, att double-buffered
    f32_live = tile_m * (3 * mem_dim + fea_dim) * 4                 # logits/e/att + y temps
    return weight_vmem + io_vmem + f32_live
    # TODO(synk): single-buffer W (pipeline_mode=pl.Buffered(1)) would halve the
    # weight term; kept on default buffering for robustness across jax versions.


def _choose_tile_m(M, fea_dim, mem_dim, io_bytes, w_bytes, vmem_budget_bytes):
    """Largest row tile fitting the generation-aware VMEM budget with >=2 grid
    steps (pipeline overlap); otherwise the smallest fitting tile covering M."""
    floor = 8 * max(1, 4 // max(io_bytes, 1))        # sublane packing for <32-bit dtypes
    candidates = [tm for tm in (16384, 8192, 4096, 2048, 1024, 512, 256,
                                128, 64, 32, 16, 8) if tm >= floor]
    fitting = [tm for tm in candidates
               if _vmem_needed_bytes(tm, fea_dim, mem_dim, io_bytes, w_bytes)
               <= vmem_budget_bytes]
    if not fitting:
        # TODO(synk): very large weights (mem_dim*fea_dim alone ~ VMEM) need a
        # mem_dim-tiled online-softmax variant; not required for these shapes.
        return floor
    multi_step = [tm for tm in fitting if pl.cdiv(M, tm) >= 2]
    if multi_step:
        return max(multi_step)
    covering = [tm for tm in fitting if tm >= M]
    return min(covering) if covering else max(fitting)


def memory_unit_pallas(x_flat, weight, *, tile_m=None):
    """x_flat: (M, fea_dim), weight: (mem_dim, fea_dim)
       -> (y (M, fea_dim), att (M, mem_dim)), both in x_flat.dtype."""
    M, fea_dim = x_flat.shape
    mem_dim, fea_dim_w = weight.shape
    assert fea_dim == fea_dim_w

    io_bytes = jnp.dtype(x_flat.dtype).itemsize
    w_bytes = jnp.dtype(weight.dtype).itemsize

    vmem_cap = _vmem_capacity_bytes()
    if tile_m is None:
        tile_m = _choose_tile_m(M, fea_dim, mem_dim, io_bytes, w_bytes,
                                vmem_budget_bytes=int(0.45 * vmem_cap))

    # Pallas handles a ragged last block (OOB input rows are padded, OOB output
    # rows dropped); per-row math means padded rows never contaminate results,
    # so no explicit jnp.pad / output slicing is needed.
    n_steps = pl.cdiv(M, tile_m)

    needed = _vmem_needed_bytes(tile_m, fea_dim, mem_dim, io_bytes, w_bytes)
    vmem_limit = needed + 2 * 1024 * 1024            # + Mosaic internal scratch margin
    vmem_limit = int(min(max(vmem_limit, 16 * 1024 * 1024), int(0.75 * vmem_cap)))

    # Exact reciprocals for f32 I/O (tight parity with the PyTorch math);
    # EUP approx reciprocals when the I/O dtype is already low precision.
    approx = jnp.dtype(x_flat.dtype) != jnp.dtype(jnp.float32)
    kernel = functools.partial(_mem_kernel, approx=bool(approx))

    y, att = pl.pallas_call(
        kernel,
        out_shape=(
            jax.ShapeDtypeStruct((M, fea_dim), x_flat.dtype),
            jax.ShapeDtypeStruct((M, mem_dim), x_flat.dtype),
        ),
        grid_spec=pltpu.PrefetchScalarGridSpec(
            num_scalar_prefetch=0,
            grid=(n_steps,),
            in_specs=[
                pl.BlockSpec((tile_m, fea_dim), lambda i: (i, 0)),
                pl.BlockSpec((mem_dim, fea_dim), lambda i: (0, 0)),
            ],
            out_specs=[
                pl.BlockSpec((tile_m, fea_dim), lambda i: (i, 0)),
                pl.BlockSpec((tile_m, mem_dim), lambda i: (i, 0)),
            ],
        ),
        compiler_params=pltpu.CompilerParams(
            dimension_semantics=("parallel",),
            vmem_limit_bytes=vmem_limit,
        ),
    )(x_flat, weight)
    return y, att


def mem_module_forward(x, weight, *, compute_dtype=None):
    """MemModule.forward for 2/3/4/5-D input with channels on axis 1.

    Returns dict with 'output' (same shape as x) and 'att'
    (x.shape with axis 1 replaced by mem_dim).  Pass compute_dtype=jnp.bfloat16
    to halve HBM traffic (mem-bound) at reduced output precision.
    """
    C = x.shape[1]
    mem_dim = weight.shape[0]
    if compute_dtype is not None:
        x = x.astype(compute_dtype)
        weight = weight.astype(compute_dtype)

    # TODO(synk): these moveaxis calls are required by the module's NCHW
    # contract; channels-last callers should use memory_unit_pallas directly
    # and skip the three full-tensor transpose passes.
    x_last = jnp.moveaxis(x, 1, -1) if x.ndim > 2 else x
    lead_shape = x_last.shape[:-1]
    x_flat = x_last.reshape(-1, C)

    y_flat, att_flat = memory_unit_pallas(x_flat, weight)

    y = y_flat.reshape(lead_shape + (C,))
    att = att_flat.reshape(lead_shape + (mem_dim,))
    if x.ndim > 2:
        y = jnp.moveaxis(y, -1, 1)
        att = jnp.moveaxis(att, -1, 1)
    return {"output": y, "att": att}


def _reference_forward(x, weight, *, compute_dtype=None):
    """Pure-JAX reference matching the PyTorch semantics, for a sanity check."""
    if compute_dtype is not None:
        x = x.astype(compute_dtype)
        weight = weight.astype(compute_dtype)
    C = x.shape[1]
    mem_dim = weight.shape[0]
    x_last = jnp.moveaxis(x, 1, -1) if x.ndim > 2 else x
    lead_shape = x_last.shape[:-1]
    xf = x_last.reshape(-1, C).astype(jnp.float32)
    w = weight.astype(jnp.float32)
    logits = xf @ w.T
    att = jax.nn.softmax(logits, axis=1)
    shifted = att - SHRINK_THRES
    att = jnp.maximum(shifted, 0.0) * att / (jnp.abs(shifted) + HSR_EPS)
    att = att / jnp.maximum(jnp.sum(jnp.abs(att), axis=1, keepdims=True), L1_EPS)
    y = att @ w
    y = y.reshape(lead_shape + (C,))
    att = att.reshape(lead_shape + (mem_dim,))
    if x.ndim > 2:
        y = jnp.moveaxis(y, -1, 1)
        att = jnp.moveaxis(att, -1, 1)
    return {"output": y, "att": att}


if __name__ == "__main__":
    # Small shapes consistent with the module: NCHW input, fea_dim = C.
    N, C, H, W = 2, 32, 16, 16          # fea_dim = 32, M = 512
    MEM_DIM = 64

    key = jax.random.PRNGKey(0)
    kx, kw = jax.random.split(key)

    x = jax.random.normal(kx, (N, C, H, W), dtype=jnp.float32)

    # MemoryUnit.reset_parameters: uniform(-stdv, stdv), stdv = 1/sqrt(fea_dim)
    stdv = 1.0 / math.sqrt(C)
    weight = jax.random.uniform(kw, (MEM_DIM, C), dtype=jnp.float32,
                                minval=-stdv, maxval=stdv)

    # --- f32 path (module-exact semantics) ---
    out = mem_module_forward(x, weight)
    y = jax.block_until_ready(out["output"])
    att = jax.block_until_ready(out["att"])

    ref = _reference_forward(x, weight)
    assert y.shape == (N, C, H, W)
    assert att.shape == (N, MEM_DIM, H, W)
    assert jnp.allclose(y, ref["output"], atol=1e-5, rtol=1e-5)
    assert jnp.allclose(att, ref["att"], atol=1e-5, rtol=1e-5)

    # --- bf16 fast path (halved HBM bytes; looser tolerance) ---
    out_bf = mem_module_forward(x, weight, compute_dtype=jnp.bfloat16)
    y_bf = jax.block_until_ready(out_bf["output"])
    att_bf = jax.block_until_ready(out_bf["att"])
    ref_bf = _reference_forward(x, weight, compute_dtype=jnp.bfloat16)
    assert y_bf.shape == (N, C, H, W)
    assert att_bf.shape == (N, MEM_DIM, H, W)
    assert jnp.allclose(y_bf.astype(jnp.float32), ref_bf["output"],
                        atol=2.5e-2, rtol=2.5e-2)
    assert jnp.allclose(att_bf.astype(jnp.float32), ref_bf["att"],
                        atol=2.5e-2, rtol=2.5e-2)

    print("KERNEL_OK")
</pallas_src>

<mosaic_0001>
module attributes {stable_mosaic.version = 11 : i64} {
  func.func @_mem_kernel(%arg0: i32, %arg1: memref<256x32xf32, #tpu.memory_space<vmem>>, %arg2: memref<64x32xf32, #tpu.memory_space<vmem>>, %arg3: memref<256x32xf32, #tpu.memory_space<vmem>>, %arg4: memref<256x64xf32, #tpu.memory_space<vmem>>) attributes {dimension_semantics = [#tpu.dimension_semantics<parallel>], iteration_bounds = array<i64: 2>, scalar_prefetch = 0 : i64, scratch_operands = 0 : i64, tpu.core_type = #tpu.core_type<tc>, window_params = [{transform_indices = @transform_0, window_bounds = array<i64: 256, 32>}, {pipeline_mode = #tpu.pipeline_mode<synchronous>, transform_indices = @transform_1, window_bounds = array<i64: 64, 32>}, {transform_indices = @transform_2, window_bounds = array<i64: 256, 32>}, {transform_indices = @transform_3, window_bounds = array<i64: 256, 64>}]} {
    %c0 = arith.constant 0 : index
    %c0_0 = arith.constant 0 : index
    %0 = vector.load %arg1[%c0, %c0_0] : memref<256x32xf32, #tpu.memory_space<vmem>>, vector<256x32xf32>
    %c0_1 = arith.constant 0 : index
    %c0_2 = arith.constant 0 : index
    %1 = vector.load %arg2[%c0_1, %c0_2] : memref<64x32xf32, #tpu.memory_space<vmem>>, vector<64x32xf32>
    %cst = arith.constant dense<0.000000e+00> : vector<256x64xf32>
    %2 = tpu.matmul %0, %1, %cst {dimension_numbers = #tpu.dot_dimension_numbers<[1], [1], [0], [0], [0, 0, 1, 0], [], []>} : vector<256x32xf32>, vector<64x32xf32>, vector<256x64xf32> -> vector<256x64xf32>
    %cst_3 = arith.constant dense<0xFF800000> : vector<256xf32>
    %3 = vector.multi_reduction <maximumf>, %2, %cst_3 [1] : vector<256x64xf32> to vector<256xf32>
    %4 = vector.shape_cast %3 : vector<256xf32> to vector<256x1xf32>
    %5 = vector.broadcast %4 : vector<256x1xf32> to vector<256x64xf32>
    %6 = arith.subf %2, %5 : vector<256x64xf32>
    %7 = math.exp %6 : vector<256x64xf32>
    %cst_4 = arith.constant dense<0.000000e+00> : vector<256xf32>
    %8 = vector.multi_reduction <add>, %7, %cst_4 [1] : vector<256x64xf32> to vector<256xf32>
    %9 = vector.shape_cast %8 : vector<256xf32> to vector<256x1xf32>
    %10 = tpu.reciprocal %9 : vector<256x1xf32> -> vector<256x1xf32>
    %11 = vector.broadcast %10 : vector<256x1xf32> to vector<256x64xf32>
    %12 = arith.mulf %7, %11 : vector<256x64xf32>
    %cst_5 = arith.constant 2.500000e-03 : f32
    %13 = vector.broadcast %cst_5 : f32 to vector<256x64xf32>
    %14 = arith.subf %12, %13 : vector<256x64xf32>
    %cst_6 = arith.constant 0.000000e+00 : f32
    %15 = vector.broadcast %cst_6 : f32 to vector<256x64xf32>
    %16 = arith.cmpf ogt, %14, %15 : vector<256x64xf32>
    %17 = arith.mulf %14, %12 : vector<256x64xf32>
    %cst_7 = arith.constant 9.99999996E-13 : f32
    %18 = vector.broadcast %cst_7 : f32 to vector<256x64xf32>
    %19 = arith.addf %14, %18 : vector<256x64xf32>
    %20 = arith.divf %17, %19 : vector<256x64xf32>
    %cst_8 = arith.constant 0.000000e+00 : f32
    %21 = vector.broadcast %cst_8 : f32 to vector<256x64xf32>
    %22 = arith.select %16, %20, %21 : vector<256x64xi1>, vector<256x64xf32>
    %cst_9 = arith.constant dense<0.000000e+00> : vector<256xf32>
    %23 = vector.multi_reduction <add>, %22, %cst_9 [1] : vector<256x64xf32> to vector<256xf32>
    %24 = vector.shape_cast %23 : vector<256xf32> to vector<256x1xf32>
    %cst_10 = arith.constant 9.99999996E-13 : f32
    %25 = vector.broadcast %cst_10 : f32 to vector<256x1xf32>
    %26 = arith.maximumf %24, %25 : vector<256x1xf32>
    %27 = tpu.reciprocal %26 : vector<256x1xf32> -> vector<256x1xf32>
    %28 = vector.broadcast %27 : vector<256x1xf32> to vector<256x64xf32>
    %29 = arith.mulf %22, %28 : vector<256x64xf32>
    %cst_11 = arith.constant dense<0.000000e+00> : vector<256x32xf32>
    %30 = tpu.matmul %29, %1, %cst_11 {dimension_numbers = #tpu.dot_dimension_numbers<[1], [0], [0], [1], [0, 0, 1, 1], [], []>} : vector<256x64xf32>, vector<64x32xf32>, vector<256x32xf32> -> vector<256x32xf32>
    %c0_12 = arith.constant 0 : index
    %c0_13 = arith.constant 0 : index
    %31 = vector.load %arg3[%c0_12, %c0_13] : memref<256x32xf32, #tpu.memory_space<vmem>>, vector<256x32xf32>
    tpu.vector_store %arg3[%c0_12, %c0_13], %30 {strides = array<i32>} : memref<256x32xf32, #tpu.memory_space<vmem>>, vector<256x32xf32>,
    %c0_14 = arith.constant 0 : index
    %c0_15 = arith.constant 0 : index
    %32 = vector.load %arg4[%c0_14, %c0_15] : memref<256x64xf32, #tpu.memory_space<vmem>>, vector<256x64xf32>
    tpu.vector_store %arg4[%c0_14, %c0_15], %29 {strides = array<i32>} : memref<256x64xf32, #tpu.memory_space<vmem>>, vector<256x64xf32>,
    return
  }
  func.func @transform_0(%arg0: i32) -> (i32, i32) {
    %c0_i32 = arith.constant 0 : i32
    %c0_i32_0 = arith.constant 0 : i32
    return %arg0, %c0_i32 : i32, i32
  }
  func.func @transform_1(%arg0: i32) -> (i32, i32) {
    %c0_i32 = arith.constant 0 : i32
    %c0_i32_0 = arith.constant 0 : i32
    %c0_i32_1 = arith.constant 0 : i32
    return %c0_i32, %c0_i32_0 : i32, i32
  }
  func.func @transform_2(%arg0: i32) -> (i32, i32) {
    %c0_i32 = arith.constant 0 : i32
    %c0_i32_0 = arith.constant 0 : i32
    return %arg0, %c0_i32 : i32, i32
  }
  func.func @transform_3(%arg0: i32) -> (i32, i32) {
    %c0_i32 = arith.constant 0 : i32
    %c0_i32_0 = arith.constant 0 : i32
    return %arg0, %c0_i32 : i32, i32
  }
}

</mosaic_0001>

<llo_original>
// kernel: tpu_custom_call.1
$region0: #{tpu_custom_call.1}
  #allocation0 [shape = 'u32[]', space=smem, size = 0x4, offset = 0x4, fixed_abs, tag = 'smem constant byte address 0x4 - core index']
  #allocation1 [shape = 'u32[144,128]{1,0:T(1,128)}', space=vmem, size = 0x12000, scoped, tag = 'internal scratch']
  %s0 = inlined_call_operand.vmem [shape: f32[512,32], index: 0, kind: input, shape index: {}]
  %s1 = inlined_call_operand.vmem [shape: f32[64,32], index: 1, kind: input, shape index: {}]
  %s2 = inlined_call_operand.vmem [shape: f32[512,32], index: 2, kind: output, shape index: {0}]
  %s3 = inlined_call_operand.vmem [shape: f32[512,64], index: 3, kind: output, shape index: {1}]
  %4 = xla_tuple %s2, %s3
  %s5 = sld [smem:[#allocation0]]
  $region49: #{tpu_custom_call.1} parent=0
    _
  %s7 = ssub.s32 1, %s5
  %s8 = scalar_select 0, %s7, %s5
  loop: start=0, step=1, limit=4
  $region2: #{tpu_custom_call.1} parent=0 // loop_pre_header
    _
  $region3: #{tpu_custom_call.1} parent=0 // loop_header
    %s10 = sphi 0, %s14
    %p11 = scmp.ge.s32.totalorder %s10, 4
    %s20 = sphi 0, %s22
    %s23 = sphi 0, %s20
    %s24 = sphi 0, %s23
    %s40 = sphi 0, %s24
    %s44 = sphi 0, %s44
    %s46 = sphi 0, %s44
    %s47 = sphi 0, %s46
    %s61 = sphi 0, %s47
    %s67 = sphi 0, %s69
    %s70 = sphi 0, %s67
    %s71 = sphi 0, %s70
    %s87 = sphi 0, %s71
    %s93 = sphi 0, %s95
    %s96 = sphi 0, %s93
    %s97 = sphi 0, %s96
    %s113 = sphi 0, %s97
  $region4: #{tpu_custom_call.1} parent=0 // loop_header_branch
    %13 = sbr.rel (%p11) target = $region8
  $region5: #{tpu_custom_call.1} parent=0 // loop_body
    %s15 = ssub.s32 %s10, 1
    %s16 = ssub.s32 %s10, 2
    %s17 = sadd.s32 %s10, 1
    %s18 = ssub.s32 %s10, %s17
    %p19 = scmp.eq.s32.totalorder %s18, 0
    %s21 = sadd.s32 %s20, 1
    %s22 = scalar_select %p19, %s20, %s21
    %p25 = pneg %p19
    %p26 = scmp.eq.s32.totalorder %s10, 1
    %p27 = por %p25, %p26
    %p28 = scmp.ne.s32.totalorder %s20, %s23
    %p29 = scmp.eq.s32.totalorder %s10, 0
    %p30 = por %p28, %p29
    %p31 = scmp.ne.s32.totalorder %s20, %s23
    %p32 = scmp.eq.s32.totalorder %s15, 1
    %p33 = por %p31, %p32
    %p34 = scmp.ne.s32.totalorder %s23, %s24
    %p35 = scmp.eq.s32.totalorder %s15, 0
    %p36 = por %p34, %p35
    %p37 = scmp.ne.s32.totalorder %s23, %s24
    %p38 = scmp.eq.s32.totalorder %s16, 1
    %p39 = por %p37, %p38
    %p41 = scmp.ne.s32.totalorder %s24, %s40
    %p42 = scmp.eq.s32.totalorder %s16, 0
    %p43 = por %p41, %p42
    %s45 = sadd.s32 %s44, 1
    %p48 = scmp.eq.s32.totalorder %s10, 1
    %p49 = scmp.ne.s32.totalorder %s44, %s46
    %p50 = scmp.eq.s32.totalorder %s10, 0
    %p51 = por %p49, %p50
    %p52 = scmp.ne.s32.totalorder %s44, %s46
    %p53 = scmp.eq.s32.totalorder %s15, 1
    %p54 = por %p52, %p53
    %p55 = scmp.ne.s32.totalorder %s46, %s47
    %p56 = scmp.eq.s32.totalorder %s15, 0
    %p57 = por %p55, %p56
    %p58 = scmp.ne.s32.totalorder %s46, %s47
    %p59 = scmp.eq.s32.totalorder %s16, 1
    %p60 = por %p58, %p59
    %p62 = scmp.ne.s32.totalorder %s47, %s61
    %p63 = scmp.eq.s32.totalorder %s16, 0
    %p64 = por %p62, %p63
    %s65 = ssub.s32 %s10, %s17
    %p66 = scmp.eq.s32.totalorder %s65, 0
    %s68 = sadd.s32 %s67, 1
    %s69 = scalar_select %p66, %s67, %s68
    %p72 = pneg %p66
    %p73 = scmp.eq.s32.totalorder %s10, 1
    %p74 = por %p72, %p73
    %p75 = scmp.ne.s32.totalorder %s67, %s70
    %p76 = scmp.eq.s32.totalorder %s10, 0
    %p77 = por %p75, %p76
    %p78 = scmp.ne.s32.totalorder %s67, %s70
    %p79 = scmp.eq.s32.totalorder %s15, 1
    %p80 = por %p78, %p79
    %p81 = scmp.ne.s32.totalorder %s70, %s71
    %p82 = scmp.eq.s32.totalorder %s15, 0
    %p83 = por %p81, %p82
    %p84 = scmp.ne.s32.totalorder %s70, %s71
    %p85 = scmp.eq.s32.totalorder %s16, 1
    %p86 = por %p84, %p85
    %p88 = scmp.ne.s32.totalorder %s71, %s87
    %p89 = scmp.eq.s32.totalorder %s16, 0
    %p90 = por %p88, %p89
    %s91 = ssub.s32 %s10, %s17
    %p92 = scmp.eq.s32.totalorder %s91, 0
    %s94 = sadd.s32 %s93, 1
    %s95 = scalar_select %p92, %s93, %s94
    %p98 = pneg %p92
    %p99 = scmp.eq.s32.totalorder %s10, 1
    %p100 = por %p98, %p99
    %p101 = scmp.ne.s32.totalorder %s93, %s96
    %p102 = scmp.eq.s32.totalorder %s10, 0
    %p103 = por %p101, %p102
    %p104 = scmp.ne.s32.totalorder %s93, %s96
    %p105 = scmp.eq.s32.totalorder %s15, 1
    %p106 = por %p104, %p105
    %p107 = scmp.ne.s32.totalorder %s96, %s97
    %p108 = scmp.eq.s32.totalorder %s15, 0
    %p109 = por %p107, %p108
    %p110 = scmp.ne.s32.totalorder %s96, %s97
    %p111 = scmp.eq.s32.totalorder %s16, 1
    %p112 = por %p110, %p111
    %p114 = scmp.ne.s32.totalorder %s97, %s113
    %p115 = scmp.eq.s32.totalorder %s16, 0
    %p116 = por %p114, %p115
    %p117 = scmp.le.s32.totalorder 1, %s10
    %p118 = scmp.lt.s32.totalorder %s10, 3
    %p119 = pnand %p117, %p118
    %p120 = pneg %p119
    // Predicated region
    $region9: #{tpu_custom_call.1} parent=5 // pred_check
      _
    $region10: #{tpu_custom_call.1} parent=5 // pred_check_branch
      %122 = sbr.rel (%p119) target = $region12
    $region11: #{tpu_custom_call.1} parent=5 // pred_region
      %s123 = ssub.s32 %s10, 1
      // Predicated region
      $region13: #{tpu_custom_call.1} parent=11 // pred_check
        %p124 = pneg %p57
      $region14: #{tpu_custom_call.1} parent=11 // pred_check_branch
        %126 = sbr.rel (%p124) target = $region16
      $region15: #{tpu_custom_call.1} parent=11 // pred_region
        _
      $region16: #{tpu_custom_call.1} parent=11 // pred_fallthru
        _
    $region12: #{tpu_custom_call.1} parent=5 // pred_fallthru
      _
    %p127 = scmp.lt.s32.totalorder %s10, 2
    // Predicated region
    $region17: #{tpu_custom_call.1} parent=5 // pred_check
      %p128 = pneg %p127
    $region18: #{tpu_custom_call.1} parent=5 // pred_check_branch
      %130 = sbr.rel (%p128) target = $region20
    $region19: #{tpu_custom_call.1} parent=5 // pred_region
      // Predicated region
      $region21: #{tpu_custom_call.1} parent=19 // pred_check
        %p131 = pneg %p30
      $region22: #{tpu_custom_call.1} parent=19 // pred_check_branch
        %133 = sbr.rel (%p131) target = $region24
      $region23: #{tpu_custom_call.1} parent=19 // pred_region
        %s134 = smul.u32 32, %s10
        %p135 = scmp.lt.s32.totalorder %s134, 63
        %s136 = scalar_select %p135, %s134, 63
        %s137 = smul.addr %s136, 8
        %s138 = scalar_lea.vmem %s0, %s137
        %s139 = smul.u32 32, %s10
      $region24: #{tpu_custom_call.1} parent=19 // pred_fallthru
        _
    $region20: #{tpu_custom_call.1} parent=5 // pred_fallthru
      _
    %p140 = scmp.le.s32.totalorder 1, %s10
    %p141 = scmp.lt.s32.totalorder %s10, 3
    %p142 = pnand %p140, %p141
    %p143 = pneg %p142
    // Predicated region
    $region25: #{tpu_custom_call.1} parent=5 // pred_check
      _
    $region26: #{tpu_custom_call.1} parent=5 // pred_check_branch
      %145 = sbr.rel (%p142) target = $region28
    $region27: #{tpu_custom_call.1} parent=5 // pred_region
      %s146 = ssub.s32 %s10, 1
      %s147 = smul.u32 32, %s15
      %p148 = scmp.lt.s32.totalorder %s147, 63
      %s149 = scalar_select %p148, %s147, 63
      %s150 = smul.addr %s149, 8
      %s151 = scalar_lea.vmem %s0, %s150
      %p152 = pneg %p36
      %p153 = pneg %p33
      %p154 = pneg %p57
      %p155 = pneg %p54
      %p156 = pneg %p83
      %p157 = pneg %p80
      %s158 = smul.u32 32, %s15
      %p159 = scmp.lt.s32.totalorder %s158, 63
      %s160 = scalar_select %p159, %s158, 63
      %s161 = smul.addr %s160, 8
      %s162 = scalar_lea.vmem %s2, %s161
      %p163 = pneg %p109
      %p164 = pneg %p106
      %s165 = smul.u32 32, %s15
      %p166 = scmp.lt.s32.totalorder %s165, 63
      %s167 = scalar_select %p166, %s165, 63
      %s168 = smul.addr %s167, 8
      %s169 = scalar_lea.vmem %s3, %s168
      %s170 = smul.u32 32, %s15
      %p171 = scmp.lt.s32.totalorder %s170, 63
      %s172 = scalar_select %p171, %s170, 63
      %s173 = smul.addr %s172, 8
      %s174 = scalar_lea.vmem %s0, %s173
      %s175 = smul.u32 32, %s15
      %s176 = smul.u32 32, %s15
      %p177 = scmp.lt.s32.totalorder %s176, 63
      %s178 = scalar_select %p177, %s176, 63
      %s179 = smul.addr %s178, 8
      %s180 = scalar_lea.vmem %s2, %s179
      %s181 = smul.u32 32, %s15
      %s182 = smul.u32 32, %s15
      %p183 = scmp.lt.s32.totalorder %s182, 63
      %s184 = scalar_select %p183, %s182, 63
      %s185 = smul.addr %s184, 8
      %s186 = scalar_lea.vmem %s3, %s185
      %s187 = smul.u32 32, %s15
      %v188 = vld [vmem:[%s174] sm:$0xff]
      %v189 = vld [vmem:[%s174 + $0x8] sm:$0xff]
      %v190 = vld [vmem:[%s174 + $0x10] sm:$0xff]
      %v191 = vld [vmem:[%s174 + $0x18] sm:$0xff]
      %v192 = vld [vmem:[%s174 + $0x20] sm:$0xff]
      %v193 = vld [vmem:[%s174 + $0x28] sm:$0xff]
      %v194 = vld [vmem:[%s174 + $0x30] sm:$0xff]
      %v195 = vld [vmem:[%s174 + $0x38] sm:$0xff]
      %v196 = vld [vmem:[%s174 + $0x40] sm:$0xff]
      %v197 = vld [vmem:[%s174 + $0x48] sm:$0xff]
      %v198 = vld [vmem:[%s174 + $0x50] sm:$0xff]
      %v199 = vld [vmem:[%s174 + $0x58] sm:$0xff]
      %v200 = vld [vmem:[%s174 + $0x60] sm:$0xff]
      %v201 = vld [vmem:[%s174 + $0x68] sm:$0xff]
      %v202 = vld [vmem:[%s174 + $0x70] sm:$0xff]
      %v203 = vld [vmem:[%s174 + $0x78] sm:$0xff]
      %v204 = vld [vmem:[%s174 + $0x80] sm:$0xff]
      %v205 = vld [vmem:[%s174 + $0x88] sm:$0xff]
      %v206 = vld [vmem:[%s174 + $0x90] sm:$0xff]
      %v207 = vld [vmem:[%s174 + $0x98] sm:$0xff]
      %v208 = vld [vmem:[%s174 + $0xa0] sm:$0xff]
      %v209 = vld [vmem:[%s174 + $0xa8] sm:$0xff]
      %v210 = vld [vmem:[%s174 + $0xb0] sm:$0xff]
      %v211 = vld [vmem:[%s174 + $0xb8] sm:$0xff]
      %v212 = vld [vmem:[%s174 + $0xc0] sm:$0xff]
      %v213 = vld [vmem:[%s174 + $0xc8] sm:$0xff]
      %v214 = vld [vmem:[%s174 + $0xd0] sm:$0xff]
      %v215 = vld [vmem:[%s174 + $0xd8] sm:$0xff]
      %v216 = vld [vmem:[%s174 + $0xe0] sm:$0xff]
      %v217 = vld [vmem:[%s174 + $0xe8] sm:$0xff]
      %v218 = vld [vmem:[%s174 + $0xf0] sm:$0xff]
      %v219 = vld [vmem:[%s174 + $0xf8] sm:$0xff]
      %v220 = vld [vmem:[%s1] sm:$0xff]
      %v221 = vld [vmem:[%s1 + $0x8] sm:$0xff]
      %v222 = vld [vmem:[%s1 + $0x10] sm:$0xff]
      %v223 = vld [vmem:[%s1 + $0x18] sm:$0xff]
      %v224 = vld [vmem:[%s1 + $0x20] sm:$0xff]
      %v225 = vld [vmem:[%s1 + $0x28] sm:$0xff]
      %v226 = vld [vmem:[%s1 + $0x30] sm:$0xff]
      %v227 = vld [vmem:[%s1 + $0x38] sm:$0xff]
      %vm228 = vcmask 261120
      %v230 = vsel %vm228, %v188, 0
      %v233 = vsel %vm228, %v189, 0
      %v236 = vsel %vm228, %v190, 0
      %v239 = vsel %vm228, %v191, 0
      %v242 = vsel %vm228, %v192, 0
      %v245 = vsel %vm228, %v193, 0
      %v248 = vsel %vm228, %v194, 0
      %v251 = vsel %vm228, %v195, 0
      %v254 = vsel %vm228, %v196, 0
      %v257 = vsel %vm228, %v197, 0
      %v260 = vsel %vm228, %v198, 0
      %v263 = vsel %vm228, %v199, 0
      %v266 = vsel %vm228, %v200, 0
      %v269 = vsel %vm228, %v201, 0
      %v272 = vsel %vm228, %v202, 0
      %v275 = vsel %vm228, %v203, 0
      %v278 = vsel %vm228, %v204, 0
      %v281 = vsel %vm228, %v205, 0
      %v284 = vsel %vm228, %v206, 0
      %v287 = vsel %vm228, %v207, 0
      %v290 = vsel %vm228, %v208, 0
      %v293 = vsel %vm228, %v209, 0
      %v296 = vsel %vm228, %v210, 0
      %v299 = vsel %vm228, %v211, 0
      %v302 = vsel %vm228, %v212, 0
      %v305 = vsel %vm228, %v213, 0
      %v308 = vsel %vm228, %v214, 0
      %v311 = vsel %vm228, %v215, 0
      %v314 = vsel %vm228, %v216, 0
      %v317 = vsel %vm228, %v217, 0
      %v320 = vsel %vm228, %v218, 0
      %v323 = vsel %vm228, %v219, 0
      %v326 = vsel %vm228, %v220, 0
      %v329 = vsel %vm228, %v221, 0
      %v332 = vsel %vm228, %v222, 0
      %v335 = vsel %vm228, %v223, 0
      %v338 = vsel %vm228, %v224, 0
      %v341 = vsel %vm228, %v225, 0
      %v344 = vsel %vm228, %v226, 0
      %v347 = vsel %vm228, %v227, 0
      %349 = vmatprep.subr.mxu0 0.0
      %350 = vmatpush1.xpose.msra.mxu0 0.0
      %351 = vmatprep.subr.mxu0 0.0
      %352 = vmatpush1.xpose.msra.mxu0 0.0
      %353 = vmatprep.subr.mxu0 0.0
      %354 = vmatpush1.xpose.msra.mxu0 0.0
      %355 = vmatprep.subr.mxu0 0.0
      %356 = vmatpush1.xpose.msra.mxu0 0.0
      %357 = vmatprep.subr.mxu0 0.0
      %358 = vmatpush1.xpose.msra.mxu0 0.0
      %359 = vmatprep.subr.mxu0 0.0
      %360 = vmatpush1.xpose.msra.mxu0 0.0
      %361 = vmatprep.subr.mxu0 0.0
      %362 = vmatpush1.xpose.msra.mxu0 0.0
      %363 = vmatprep.subr.mxu0 0.0
      %364 = vmatpush1.xpose.msra.mxu0 0.0
      %365 = vmatprep.subr.mxu0 0.0
      %366 = vmatpush1.xpose.msra.mxu0 %v347
      %367 = vmatprep.subr.mxu0 0.0
      %368 = vmatpush1.xpose.msra.mxu0 %v344
      %369 = vmatprep.subr.mxu0 0.0
      %370 = vmatpush1.xpose.msra.mxu0 %v341
      %371 = vmatprep.subr.mxu0 0.0
      %372 = vmatpush1.xpose.msra.mxu0 %v338
      %373 = vmatprep.subr.mxu0 0.0
      %374 = vmatpush1.xpose.msra.mxu0 %v335
      %375 = vmatprep.subr.mxu0 0.0
      %376 = vmatpush1.xpose.msra.mxu0 %v332
      %377 = vmatprep.subr.mxu0 0.0
      %378 = vmatpush1.xpose.msra.mxu0 %v329
      %379 = vmatprep.subr.mxu0 0.0
      %380 = vmatpush1.xpose.msra.mxu0 %v326
      %381 = vmatprep.subr.mxu0 0.0
      %382 = vmatpush2.xpose.msra.mxu0 0.0
      %383 = vmatprep.subr.mxu0 0.0
      %384 = vmatpush2.xpose.msra.mxu0 0.0
      %385 = vmatprep.subr.mxu0 0.0
      %386 = vmatpush2.xpose.msra.mxu0 0.0
      %387 = vmatprep.subr.mxu0 0.0
      %388 = vmatpush2.xpose.msra.mxu0 0.0
      %389 = vmatprep.subr.mxu0 0.0
      %390 = vmatpush2.xpose.msra.mxu0 0.0
      %391 = vmatprep.subr.mxu0 0.0
      %392 = vmatpush2.xpose.msra.mxu0 0.0
      %393 = vmatprep.subr.mxu0 0.0
      %394 = vmatpush2.xpose.msra.mxu0 0.0
      %395 = vmatprep.subr.mxu0 0.0
      %396 = vmatpush2.xpose.msra.mxu0 0.0
      %397 = vmatprep.subr.mxu0 0.0
      %398 = vmatpush2.xpose.msra.mxu0 0.0
      %399 = vmatprep.subr.mxu0 0.0
      %400 = vmatpush2.xpose.msra.mxu0 0.0
      %401 = vmatprep.subr.mxu0 0.0
      %402 = vmatpush2.xpose.msra.mxu0 0.0
      %403 = vmatprep.subr.mxu0 0.0
      %404 = vmatpush2.xpose.msra.mxu0 0.0
      %405 = vmatprep.subr.mxu0 0.0
      %406 = vmatpush2.xpose.msra.mxu0 0.0
      %407 = vmatprep.subr.mxu0 0.0
      %408 = vmatpush2.xpose.msra.mxu0 0.0
      %409 = vmatprep.subr.mxu0 0.0
      %410 = vmatpush2.xpose.msra.mxu0 0.0
      %411 = vmatprep.subr.mxu0 0.0
      %412 = vmatpush2.xpose.msra.mxu0 0.0
      %413 = vmatprep.mubr.f32.mxu0 0.0
      %414 = vmatmul.mubr.f32.gmra.mxu0 %v230
      %v415 = vpop.f32.mrf.mxu0
      %v416 = vadd.f32 0.0, %v415
      %v417 = vpop.f32.mrf.mxu0
      %418 = vmatprep.mubr.f32.mxu0 0.0
      %419 = vmatmul.mubr.f32.gmra.mxu0 %v233
      %v420 = vpop.f32.mrf.mxu0
      %v421 = vadd.f32 0.0, %v420
      %v422 = vpop.f32.mrf.mxu0
      %423 = vmatprep.mubr.f32.mxu0 0.0
      %424 = vmatmul.mubr.f32.gmra.mxu0 %v236
      %v425 = vpop.f32.mrf.mxu0
      %v426 = vadd.f32 0.0, %v425
      %v427 = vpop.f32.mrf.mxu0
      %428 = vmatprep.mubr.f32.mxu0 0.0
      %429 = vmatmul.mubr.f32.gmra.mxu0 %v239
      %v430 = vpop.f32.mrf.mxu0
      %v431 = vadd.f32 0.0, %v430
      %v432 = vpop.f32.mrf.mxu0
      %433 = vmatprep.mubr.f32.mxu0 0.0
      %434 = vmatmul.mubr.f32.gmra.mxu0 %v242
      %v435 = vpop.f32.mrf.mxu0
      %v436 = vadd.f32 0.0, %v435
      %v437 = vpop.f32.mrf.mxu0
      %438 = vmatprep.mubr.f32.mxu0 0.0
      %439 = vmatmul.mubr.f32.gmra.mxu0 %v245
      %v440 = vpop.f32.mrf.mxu0
      %v441 = vadd.f32 0.0, %v440
      %v442 = vpop.f32.mrf.mxu0
      %443 = vmatprep.mubr.f32.mxu0 0.0
      %444 = vmatmul.mubr.f32.gmra.mxu0 %v248
      %v445 = vpop.f32.mrf.mxu0
      %v446 = vadd.f32 0.0, %v445
      %v447 = vpop.f32.mrf.mxu0
      %448 = vmatprep.mubr.f32.mxu0 0.0
      %449 = vmatmul.mubr.f32.gmra.mxu0 %v251
      %v450 = vpop.f32.mrf.mxu0
      %v451 = vadd.f32 0.0, %v450
      %v452 = vpop.f32.mrf.mxu0
      %453 = vmatprep.mubr.f32.mxu0 0.0
      %454 = vmatmul.mubr.f32.gmra.mxu0 %v254
      %v455 = vpop.f32.mrf.mxu0
      %v456 = vadd.f32 0.0, %v455
      %v457 = vpop.f32.mrf.mxu0
      %458 = vmatprep.mubr.f32.mxu0 0.0
      %459 = vmatmul.mubr.f32.gmra.mxu0 %v257
      %v460 = vpop.f32.mrf.mxu0
      %v461 = vadd.f32 0.0, %v460
      %v462 = vpop.f32.mrf.mxu0
      %463 = vmatprep.mubr.f32.mxu0 0.0
      %464 = vmatmul.mubr.f32.gmra.mxu0 %v260
      %v465 = vpop.f32.mrf.mxu0
      %v466 = vadd.f32 0.0, %v465
      %v467 = vpop.f32.mrf.mxu0
      %468 = vmatprep.mubr.f32.mxu0 0.0
      %469 = vmatmul.mubr.f32.gmra.mxu0 %v263
      %v470 = vpop.f32.mrf.mxu0
      %v471 = vadd.f32 0.0, %v470
      %v472 = vpop.f32.mrf.mxu0
      %473 = vmatprep.mubr.f32.mxu0 0.0
      %474 = vmatmul.mubr.f32.gmra.mxu0 %v266
      %v475 = vpop.f32.mrf.mxu0
      %v476 = vadd.f32 0.0, %v475
      %v477 = vpop.f32.mrf.mxu0
      %478 = vmatprep.mubr.f32.mxu0 0.0
      %479 = vmatmul.mubr.f32.gmra.mxu0 %v269
      %v480 = vpop.f32.mrf.mxu0
      %v481 = vadd.f32 0.0, %v480
      %v482 = vpop.f32.mrf.mxu0
      %483 = vmatprep.mubr.f32.mxu0 0.0
      %484 = vmatmul.mubr.f32.gmra.mxu0 %v272
      %v485 = vpop.f32.mrf.mxu0
      %v486 = vadd.f32 0.0, %v485
      %v487 = vpop.f32.mrf.mxu0
      %488 = vmatprep.mubr.f32.mxu0 0.0
      %489 = vmatmul.mubr.f32.gmra.mxu0 %v275
      %v490 = vpop.f32.mrf.mxu0
      %v491 = vadd.f32 0.0, %v490
      %v492 = vpop.f32.mrf.mxu0
      %493 = vmatprep.mubr.f32.mxu0 0.0
      %494 = vmatmul.mubr.f32.gmra.mxu0 %v278
      %v495 = vpop.f32.mrf.mxu0
      %v496 = vadd.f32 0.0, %v495
      %v497 = vpop.f32.mrf.mxu0
      %498 = vmatprep.mubr.f32.mxu0 0.0
      %499 = vmatmul.mubr.f32.gmra.mxu0 %v281
      %v500 = vpop.f32.mrf.mxu0
      %v501 = vadd.f32 0.0, %v500
      %v502 = vpop.f32.mrf.mxu0
      %503 = vmatprep.mubr.f32.mxu0 0.0
      %504 = vmatmul.mubr.f32.gmra.mxu0 %v284
      %v505 = vpop.f32.mrf.mxu0
      %v506 = vadd.f32 0.0, %v505
      %v507 = vpop.f32.mrf.mxu0
      %508 = vmatprep.mubr.f32.mxu0 0.0
      %509 = vmatmul.mubr.f32.gmra.mxu0 %v287
      %v510 = vpop.f32.mrf.mxu0
      %v511 = vadd.f32 0.0, %v510
      %v512 = vpop.f32.mrf.mxu0
      %513 = vmatprep.mubr.f32.mxu0 0.0
      %514 = vmatmul.mubr.f32.gmra.mxu0 %v290
      %v515 = vpop.f32.mrf.mxu0
      %v516 = vadd.f32 0.0, %v515
      %v517 = vpop.f32.mrf.mxu0
      %518 = vmatprep.mubr.f32.mxu0 0.0
      %519 = vmatmul.mubr.f32.gmra.mxu0 %v293
      %v520 = vpop.f32.mrf.mxu0
      %v521 = vadd.f32 0.0, %v520
      %v522 = vpop.f32.mrf.mxu0
      %523 = vmatprep.mubr.f32.mxu0 0.0
      %524 = vmatmul.mubr.f32.gmra.mxu0 %v296
      %v525 = vpop.f32.mrf.mxu0
      %v526 = vadd.f32 0.0, %v525
      %v527 = vpop.f32.mrf.mxu0
      %528 = vmatprep.mubr.f32.mxu0 0.0
      %529 = vmatmul.mubr.f32.gmra.mxu0 %v299
      %v530 = vpop.f32.mrf.mxu0
      %v531 = vadd.f32 0.0, %v530
      %v532 = vpop.f32.mrf.mxu0
      %533 = vmatprep.mubr.f32.mxu0 0.0
      %534 = vmatmul.mubr.f32.gmra.mxu0 %v302
      %v535 = vpop.f32.mrf.mxu0
      %v536 = vadd.f32 0.0, %v535
      %v537 = vpop.f32.mrf.mxu0
      %538 = vmatprep.mubr.f32.mxu0 0.0
      %539 = vmatmul.mubr.f32.gmra.mxu0 %v305
      %v540 = vpop.f32.mrf.mxu0
      %v541 = vadd.f32 0.0, %v540
      %v542 = vpop.f32.mrf.mxu0
      %543 = vmatprep.mubr.f32.mxu0 0.0
      %544 = vmatmul.mubr.f32.gmra.mxu0 %v308
      %v545 = vpop.f32.mrf.mxu0
      %v546 = vadd.f32 0.0, %v545
      %v547 = vpop.f32.mrf.mxu0
      %548 = vmatprep.mubr.f32.mxu0 0.0
      %549 = vmatmul.mubr.f32.gmra.mxu0 %v311
      %v550 = vpop.f32.mrf.mxu0
      %v551 = vadd.f32 0.0, %v550
      %v552 = vpop.f32.mrf.mxu0
      %553 = vmatprep.mubr.f32.mxu0 0.0
      %554 = vmatmul.mubr.f32.gmra.mxu0 %v314
      %v555 = vpop.f32.mrf.mxu0
      %v556 = vadd.f32 0.0, %v555
      %v557 = vpop.f32.mrf.mxu0
      %558 = vmatprep.mubr.f32.mxu0 0.0
      %559 = vmatmul.mubr.f32.gmra.mxu0 %v317
      %v560 = vpop.f32.mrf.mxu0
      %v561 = vadd.f32 0.0, %v560
      %v562 = vpop.f32.mrf.mxu0
      %563 = vmatprep.mubr.f32.mxu0 0.0
      %564 = vmatmul.mubr.f32.gmra.mxu0 %v320
      %v565 = vpop.f32.mrf.mxu0
      %v566 = vadd.f32 0.0, %v565
      %v567 = vpop.f32.mrf.mxu0
      %568 = vmatprep.mubr.f32.mxu0 0.0
      %569 = vmatmul.mubr.f32.gmra.mxu0 %v323
      %v570 = vpop.f32.mrf.mxu0
      %v571 = vadd.f32 0.0, %v570
      %v572 = vpop.f32.mrf.mxu0
      %573 = vdwg.mxu0
      %vm574 = vcmask 523264
      %v575 = vsel %vm574, %v416, -inf
      %576 = vmax.xlane.f32.xlu0 %v575
      %v577 = vpop.xlane.xlu0 %576
      %v578 = vsel %vm574, %v421, -inf
      %579 = vmax.xlane.f32.xlu0 %v578
      %v580 = vpop.xlane.xlu0 %579
      %v581 = vsel %vm574, %v426, -inf
      %582 = vmax.xlane.f32.xlu0 %v581
      %v583 = vpop.xlane.xlu0 %582
      %v584 = vsel %vm574, %v431, -inf
      %585 = vmax.xlane.f32.xlu0 %v584
      %v586 = vpop.xlane.xlu0 %585
      %v587 = vsel %vm574, %v436, -inf
      %588 = vmax.xlane.f32.xlu0 %v587
      %v589 = vpop.xlane.xlu0 %588
      %v590 = vsel %vm574, %v441, -inf
      %591 = vmax.xlane.f32.xlu0 %v590
      %v592 = vpop.xlane.xlu0 %591
      %v593 = vsel %vm574, %v446, -inf
      %594 = vmax.xlane.f32.xlu0 %v593
      %v595 = vpop.xlane.xlu0 %594
      %v596 = vsel %vm574, %v451, -inf
      %597 = vmax.xlane.f32.xlu0 %v596
      %v598 = vpop.xlane.xlu0 %597
      %v599 = vsel %vm574, %v456, -inf
      %600 = vmax.xlane.f32.xlu0 %v599
      %v601 = vpop.xlane.xlu0 %600
      %v602 = vsel %vm574, %v461, -inf
      %603 = vmax.xlane.f32.xlu0 %v602
      %v604 = vpop.xlane.xlu0 %603
      %v605 = vsel %vm574, %v466, -inf
      %606 = vmax.xlane.f32.xlu0 %v605
      %v607 = vpop.xlane.xlu0 %606
      %v608 = vsel %vm574, %v471, -inf
      %609 = vmax.xlane.f32.xlu0 %v608
      %v610 = vpop.xlane.xlu0 %609
      %v611 = vsel %vm574, %v476, -inf
      %612 = vmax.xlane.f32.xlu0 %v611
      %v613 = vpop.xlane.xlu0 %612
      %v614 = vsel %vm574, %v481, -inf
      %615 = vmax.xlane.f32.xlu0 %v614
      %v616 = vpop.xlane.xlu0 %615
      %v617 = vsel %vm574, %v486, -inf
      %618 = vmax.xlane.f32.xlu0 %v617
      %v619 = vpop.xlane.xlu0 %618
      %v620 = vsel %vm574, %v491, -inf
      %621 = vmax.xlane.f32.xlu0 %v620
      %v622 = vpop.xlane.xlu0 %621
      %v623 = vsel %vm574, %v496, -inf
      %624 = vmax.xlane.f32.xlu0 %v623
      %v625 = vpop.xlane.xlu0 %624
      %v626 = vsel %vm574, %v501, -inf
      %627 = vmax.xlane.f32.xlu0 %v626
      %v628 = vpop.xlane.xlu0 %627
      %v629 = vsel %vm574, %v506, -inf
      %630 = vmax.xlane.f32.xlu0 %v629
      %v631 = vpop.xlane.xlu0 %630
      %v632 = vsel %vm574, %v511, -inf
      %633 = vmax.xlane.f32.xlu0 %v632
      %v634 = vpop.xlane.xlu0 %633
      %v635 = vsel %vm574, %v516, -inf
      %636 = vmax.xlane.f32.xlu0 %v635
      %v637 = vpop.xlane.xlu0 %636
      %v638 = vsel %vm574, %v521, -inf
      %639 = vmax.xlane.f32.xlu0 %v638
      %v640 = vpop.xlane.xlu0 %639
      %v641 = vsel %vm574, %v526, -inf
      %642 = vmax.xlane.f32.xlu0 %v641
      %v643 = vpop.xlane.xlu0 %642
      %v644 = vsel %vm574, %v531, -inf
      %645 = vmax.xlane.f32.xlu0 %v644
      %v646 = vpop.xlane.xlu0 %645
      %v647 = vsel %vm574, %v536, -inf
      %648 = vmax.xlane.f32.xlu0 %v647
      %v649 = vpop.xlane.xlu0 %648
      %v650 = vsel %vm574, %v541, -inf
      %651 = vmax.xlane.f32.xlu0 %v650
      %v652 = vpop.xlane.xlu0 %651
      %v653 = vsel %vm574, %v546, -inf
      %654 = vmax.xlane.f32.xlu0 %v653
      %v655 = vpop.xlane.xlu0 %654
      %v656 = vsel %vm574, %v551, -inf
      %657 = vmax.xlane.f32.xlu0 %v656
      %v658 = vpop.xlane.xlu0 %657
      %v659 = vsel %vm574, %v556, -inf
      %660 = vmax.xlane.f32.xlu0 %v659
      %v661 = vpop.xlane.xlu0 %660
      %v662 = vsel %vm574, %v561, -inf
      %663 = vmax.xlane.f32.xlu0 %v662
      %v664 = vpop.xlane.xlu0 %663
      %v665 = vsel %vm574, %v566, -inf
      %666 = vmax.xlane.f32.xlu0 %v665
      %v667 = vpop.xlane.xlu0 %666
      %v668 = vsel %vm574, %v571, -inf
      %669 = vmax.xlane.f32.xlu0 %v668
      %v670 = vpop.xlane.xlu0 %669
      %v671 = vsub.f32 %v416, %v577
      %v672 = vsub.f32 %v421, %v580
      %v673 = vsub.f32 %v426, %v583
      %v674 = vsub.f32 %v431, %v586
      %v675 = vsub.f32 %v436, %v589
      %v676 = vsub.f32 %v441, %v592
      %v677 = vsub.f32 %v446, %v595
      %v678 = vsub.f32 %v451, %v598
      %v679 = vsub.f32 %v456, %v601
      %v680 = vsub.f32 %v461, %v604
      %v681 = vsub.f32 %v466, %v607
      %v682 = vsub.f32 %v471, %v610
      %v683 = vsub.f32 %v476, %v613
      %v684 = vsub.f32 %v481, %v616
      %v685 = vsub.f32 %v486, %v619
      %v686 = vsub.f32 %v491, %v622
      %v687 = vsub.f32 %v496, %v625
      %v688 = vsub.f32 %v501, %v628
      %v689 = vsub.f32 %v506, %v631
      %v690 = vsub.f32 %v511, %v634
      %v691 = vsub.f32 %v516, %v637
      %v692 = vsub.f32 %v521, %v640
      %v693 = vsub.f32 %v526, %v643
      %v694 = vsub.f32 %v531, %v646
      %v695 = vsub.f32 %v536, %v649
      %v696 = vsub.f32 %v541, %v652
      %v697 = vsub.f32 %v546, %v655
      %v698 = vsub.f32 %v551, %v658
      %v699 = vsub.f32 %v556, %v661
      %v700 = vsub.f32 %v561, %v664
      %v701 = vsub.f32 %v566, %v667
      %v702 = vsub.f32 %v571, %v670
      %v703 = vmul.f32 %v671, 1.442695
      %v704 = vpow.pop %v703
      %v705 = vmul.f32 %v672, 1.442695
      %v706 = vpow.pop %v705
      %v707 = vmul.f32 %v673, 1.442695
      %v708 = vpow.pop %v707
      %v709 = vmul.f32 %v674, 1.442695
      %v710 = vpow.pop %v709
      %v711 = vmul.f32 %v675, 1.442695
      %v712 = vpow.pop %v711
      %v713 = vmul.f32 %v676, 1.442695
      %v714 = vpow.pop %v713
      %v715 = vmul.f32 %v677, 1.442695
      %v716 = vpow.pop %v715
      %v717 = vmul.f32 %v678, 1.442695
      %v718 = vpow.pop %v717
      %v719 = vmul.f32 %v679, 1.442695
      %v720 = vpow.pop %v719
      %v721 = vmul.f32 %v680, 1.442695
      %v722 = vpow.pop %v721
      %v723 = vmul.f32 %v681, 1.442695
      %v724 = vpow.pop %v723
      %v725 = vmul.f32 %v682, 1.442695
      %v726 = vpow.pop %v725
      %v727 = vmul.f32 %v683, 1.442695
      %v728 = vpow.pop %v727
      %v729 = vmul.f32 %v684, 1.442695
      %v730 = vpow.pop %v729
      %v731 = vmul.f32 %v685, 1.442695
      %v732 = vpow.pop %v731
      %v733 = vmul.f32 %v686, 1.442695
      %v734 = vpow.pop %v733
      %v735 = vmul.f32 %v687, 1.442695
      %v736 = vpow.pop %v735
      %v737 = vmul.f32 %v688, 1.442695
      %v738 = vpow.pop %v737
      %v739 = vmul.f32 %v689, 1.442695
      %v740 = vpow.pop %v739
      %v741 = vmul.f32 %v690, 1.442695
      %v742 = vpow.pop %v741
      %v743 = vmul.f32 %v691, 1.442695
      %v744 = vpow.pop %v743
      %v745 = vmul.f32 %v692, 1.442695
      %v746 = vpow.pop %v745
      %v747 = vmul.f32 %v693, 1.442695
      %v748 = vpow.pop %v747
      %v749 = vmul.f32 %v694, 1.442695
      %v750 = vpow.pop %v749
      %v751 = vmul.f32 %v695, 1.442695
      %v752 = vpow.pop %v751
      %v753 = vmul.f32 %v696, 1.442695
      %v754 = vpow.pop %v753
      %v755 = vmul.f32 %v697, 1.442695
      %v756 = vpow.pop %v755
      %v757 = vmul.f32 %v698, 1.442695
      %v758 = vpow.pop %v757
      %v759 = vmul.f32 %v699, 1.442695
      %v760 = vpow.pop %v759
      %v761 = vmul.f32 %v700, 1.442695
      %v762 = vpow.pop %v761
      %v763 = vmul.f32 %v701, 1.442695
      %v764 = vpow.pop %v763
      %v765 = vmul.f32 %v702, 1.442695
      %v766 = vpow.pop %v765
      %v767 = vsel %vm574, %v704, 0.0
      %768 = vadd.xlane.f32.xlu0 %v767
      %v769 = vpop.xlane.xlu0 %768
      %v770 = vsel %vm574, %v706, 0.0
      %771 = vadd.xlane.f32.xlu0 %v770
      %v772 = vpop.xlane.xlu0 %771
      %v773 = vsel %vm574, %v708, 0.0
      %774 = vadd.xlane.f32.xlu0 %v773
      %v775 = vpop.xlane.xlu0 %774
      %v776 = vsel %vm574, %v710, 0.0
      %777 = vadd.xlane.f32.xlu0 %v776
      %v778 = vpop.xlane.xlu0 %777
      %v779 = vsel %vm574, %v712, 0.0
      %780 = vadd.xlane.f32.xlu0 %v779
      %v781 = vpop.xlane.xlu0 %780
      %v782 = vsel %vm574, %v714, 0.0
      %783 = vadd.xlane.f32.xlu0 %v782
      %v784 = vpop.xlane.xlu0 %783
      %v785 = vsel %vm574, %v716, 0.0
      %786 = vadd.xlane.f32.xlu0 %v785
      %v787 = vpop.xlane.xlu0 %786
      %v788 = vsel %vm574, %v718, 0.0
      %789 = vadd.xlane.f32.xlu0 %v788
      %v790 = vpop.xlane.xlu0 %789
      %v791 = vsel %vm574, %v720, 0.0
      %792 = vadd.xlane.f32.xlu0 %v791
      %v793 = vpop.xlane.xlu0 %792
      %v794 = vsel %vm574, %v722, 0.0
      %795 = vadd.xlane.f32.xlu0 %v794
      %v796 = vpop.xlane.xlu0 %795
      %v797 = vsel %vm574, %v724, 0.0
      %798 = vadd.xlane.f32.xlu0 %v797
      %v799 = vpop.xlane.xlu0 %798
      %v800 = vsel %vm574, %v726, 0.0
      %801 = vadd.xlane.f32.xlu0 %v800
      %v802 = vpop.xlane.xlu0 %801
      %v803 = vsel %vm574, %v728, 0.0
      %804 = vadd.xlane.f32.xlu0 %v803
      %v805 = vpop.xlane.xlu0 %804
      %v806 = vsel %vm574, %v730, 0.0
      %807 = vadd.xlane.f32.xlu0 %v806
      %v808 = vpop.xlane.xlu0 %807
      %v809 = vsel %vm574, %v732, 0.0
      %810 = vadd.xlane.f32.xlu0 %v809
      %v811 = vpop.xlane.xlu0 %810
      %v812 = vsel %vm574, %v734, 0.0
      %813 = vadd.xlane.f32.xlu0 %v812
      %v814 = vpop.xlane.xlu0 %813
      %v815 = vsel %vm574, %v736, 0.0
      %816 = vadd.xlane.f32.xlu0 %v815
      %v817 = vpop.xlane.xlu0 %816
      %v818 = vsel %vm574, %v738, 0.0
      %819 = vadd.xlane.f32.xlu0 %v818
      %v820 = vpop.xlane.xlu0 %819
      %v821 = vsel %vm574, %v740, 0.0
      %822 = vadd.xlane.f32.xlu0 %v821
      %v823 = vpop.xlane.xlu0 %822
      %v824 = vsel %vm574, %v742, 0.0
      %825 = vadd.xlane.f32.xlu0 %v824
      %v826 = vpop.xlane.xlu0 %825
      %v827 = vsel %vm574, %v744, 0.0
      %828 = vadd.xlane.f32.xlu0 %v827
      %v829 = vpop.xlane.xlu0 %828
      %v830 = vsel %vm574, %v746, 0.0
      %831 = vadd.xlane.f32.xlu0 %v830
      %v832 = vpop.xlane.xlu0 %831
      %v833 = vsel %vm574, %v748, 0.0
      %834 = vadd.xlane.f32.xlu0 %v833
      %v835 = vpop.xlane.xlu0 %834
      %v836 = vsel %vm574, %v750, 0.0
      %837 = vadd.xlane.f32.xlu0 %v836
      %v838 = vpop.xlane.xlu0 %837
      %v839 = vsel %vm574, %v752, 0.0
      %840 = vadd.xlane.f32.xlu0 %v839
      %v841 = vpop.xlane.xlu0 %840
      %v842 = vsel %vm574, %v754, 0.0
      %843 = vadd.xlane.f32.xlu0 %v842
      %v844 = vpop.xlane.xlu0 %843
      %v845 = vsel %vm574, %v756, 0.0
      %846 = vadd.xlane.f32.xlu0 %v845
      %v847 = vpop.xlane.xlu0 %846
      %v848 = vsel %vm574, %v758, 0.0
      %849 = vadd.xlane.f32.xlu0 %v848
      %v850 = vpop.xlane.xlu0 %849
      %v851 = vsel %vm574, %v760, 0.0
      %852 = vadd.xlane.f32.xlu0 %v851
      %v853 = vpop.xlane.xlu0 %852
      %v854 = vsel %vm574, %v762, 0.0
      %855 = vadd.xlane.f32.xlu0 %v854
      %v856 = vpop.xlane.xlu0 %855
      %v857 = vsel %vm574, %v764, 0.0
      %858 = vadd.xlane.f32.xlu0 %v857
      %v859 = vpop.xlane.xlu0 %858
      %v860 = vsel %vm574, %v766, 0.0
      %861 = vadd.xlane.f32.xlu0 %v860
      %v862 = vpop.xlane.xlu0 %861
      %v863 = vrcp.pop %v769
      %v864 = vrcp.pop %v772
      %v865 = vrcp.pop %v775
      %v866 = vrcp.pop %v778
      %v867 = vrcp.pop %v781
      %v868 = vrcp.pop %v784
      %v869 = vrcp.pop %v787
      %v870 = vrcp.pop %v790
      %v871 = vrcp.pop %v793
      %v872 = vrcp.pop %v796
      %v873 = vrcp.pop %v799
      %v874 = vrcp.pop %v802
      %v875 = vrcp.pop %v805
      %v876 = vrcp.pop %v808
      %v877 = vrcp.pop %v811
      %v878 = vrcp.pop %v814
      %v879 = vrcp.pop %v817
      %v880 = vrcp.pop %v820
      %v881 = vrcp.pop %v823
      %v882 = vrcp.pop %v826
      %v883 = vrcp.pop %v829
      %v884 = vrcp.pop %v832
      %v885 = vrcp.pop %v835
      %v886 = vrcp.pop %v838
      %v887 = vrcp.pop %v841
      %v888 = vrcp.pop %v844
      %v889 = vrcp.pop %v847
      %v890 = vrcp.pop %v850
      %v891 = vrcp.pop %v853
      %v892 = vrcp.pop %v856
      %v893 = vrcp.pop %v859
      %v894 = vrcp.pop %v862
      %v895 = vmul.f32 %v704, %v863
      %v896 = vmul.f32 %v706, %v864
      %v897 = vmul.f32 %v708, %v865
      %v898 = vmul.f32 %v710, %v866
      %v899 = vmul.f32 %v712, %v867
      %v900 = vmul.f32 %v714, %v868
      %v901 = vmul.f32 %v716, %v869
      %v902 = vmul.f32 %v718, %v870
      %v903 = vmul.f32 %v720, %v871
      %v904 = vmul.f32 %v722, %v872
      %v905 = vmul.f32 %v724, %v873
      %v906 = vmul.f32 %v726, %v874
      %v907 = vmul.f32 %v728, %v875
      %v908 = vmul.f32 %v730, %v876
      %v909 = vmul.f32 %v732, %v877
      %v910 = vmul.f32 %v734, %v878
      %v911 = vmul.f32 %v736, %v879
      %v912 = vmul.f32 %v738, %v880
      %v913 = vmul.f32 %v740, %v881
      %v914 = vmul.f32 %v742, %v882
      %v915 = vmul.f32 %v744, %v883
      %v916 = vmul.f32 %v746, %v884
      %v917 = vmul.f32 %v748, %v885
      %v918 = vmul.f32 %v750, %v886
      %v919 = vmul.f32 %v752, %v887
      %v920 = vmul.f32 %v754, %v888
      %v921 = vmul.f32 %v756, %v889
      %v922 = vmul.f32 %v758, %v890
      %v923 = vmul.f32 %v760, %v891
      %v924 = vmul.f32 %v762, %v892
      %v925 = vmul.f32 %v764, %v893
      %v926 = vmul.f32 %v766, %v894
      %v927 = vsub.f32 %v895, 0.0025
      %v928 = vsub.f32 %v896, 0.0025
      %v929 = vsub.f32 %v897, 0.0025
      %v930 = vsub.f32 %v898, 0.0025
      %v931 = vsub.f32 %v899, 0.0025
      %v932 = vsub.f32 %v900, 0.0025
      %v933 = vsub.f32 %v901, 0.0025
      %v934 = vsub.f32 %v902, 0.0025
      %v935 = vsub.f32 %v903, 0.0025
      %v936 = vsub.f32 %v904, 0.0025
      %v937 = vsub.f32 %v905, 0.0025
      %v938 = vsub.f32 %v906, 0.0025
      %v939 = vsub.f32 %v907, 0.0025
      %v940 = vsub.f32 %v908, 0.0025
      %v941 = vsub.f32 %v909, 0.0025
      %v942 = vsub.f32 %v910, 0.0025
      %v943 = vsub.f32 %v911, 0.0025
      %v944 = vsub.f32 %v912, 0.0025
      %v945 = vsub.f32 %v913, 0.0025
      %v946 = vsub.f32 %v914, 0.0025
      %v947 = vsub.f32 %v915, 0.0025
      %v948 = vsub.f32 %v916, 0.0025
      %v949 = vsub.f32 %v917, 0.0025
      %v950 = vsub.f32 %v918, 0.0025
      %v951 = vsub.f32 %v919, 0.0025
      %v952 = vsub.f32 %v920, 0.0025
      %v953 = vsub.f32 %v921, 0.0025
      %v954 = vsub.f32 %v922, 0.0025
      %v955 = vsub.f32 %v923, 0.0025
      %v956 = vsub.f32 %v924, 0.0025
      %v957 = vsub.f32 %v925, 0.0025
      %v958 = vsub.f32 %v926, 0.0025
      %vm959 = vcmp.gt.f32.partialorder %v927, 0.0
      %vm960 = vcmp.gt.f32.partialorder %v928, 0.0
      %vm961 = vcmp.gt.f32.partialorder %v929, 0.0
      %vm962 = vcmp.gt.f32.partialorder %v930, 0.0
      %vm963 = vcmp.gt.f32.partialorder %v931, 0.0
      %vm964 = vcmp.gt.f32.partialorder %v932, 0.0
      %vm965 = vcmp.gt.f32.partialorder %v933, 0.0
      %vm966 = vcmp.gt.f32.partialorder %v934, 0.0
      %vm967 = vcmp.gt.f32.partialorder %v935, 0.0
      %vm968 = vcmp.gt.f32.partialorder %v936, 0.0
      %vm969 = vcmp.gt.f32.partialorder %v937, 0.0
      %vm970 = vcmp.gt.f32.partialorder %v938, 0.0
      %vm971 = vcmp.gt.f32.partialorder %v939, 0.0
      %vm972 = vcmp.gt.f32.partialorder %v940, 0.0
      %vm973 = vcmp.gt.f32.partialorder %v941, 0.0
      %vm974 = vcmp.gt.f32.partialorder %v942, 0.0
      %vm975 = vcmp.gt.f32.partialorder %v943, 0.0
      %vm976 = vcmp.gt.f32.partialorder %v944, 0.0
      %vm977 = vcmp.gt.f32.partialorder %v945, 0.0
      %vm978 = vcmp.gt.f32.partialorder %v946, 0.0
      %vm979 = vcmp.gt.f32.partialorder %v947, 0.0
      %vm980 = vcmp.gt.f32.partialorder %v948, 0.0
      %vm981 = vcmp.gt.f32.partialorder %v949, 0.0
      %vm982 = vcmp.gt.f32.partialorder %v950, 0.0
      %vm983 = vcmp.gt.f32.partialorder %v951, 0.0
      %vm984 = vcmp.gt.f32.partialorder %v952, 0.0
      %vm985 = vcmp.gt.f32.partialorder %v953, 0.0
      %vm986 = vcmp.gt.f32.partialorder %v954, 0.0
      %vm987 = vcmp.gt.f32.partialorder %v955, 0.0
      %vm988 = vcmp.gt.f32.partialorder %v956, 0.0
      %vm989 = vcmp.gt.f32.partialorder %v957, 0.0
      %vm990 = vcmp.gt.f32.partialorder %v958, 0.0
      %v991 = vmul.f32 %v927, %v895
      %v992 = vmul.f32 %v928, %v896
      %v993 = vmul.f32 %v929, %v897
      %v994 = vmul.f32 %v930, %v898
      %v995 = vmul.f32 %v931, %v899
      %v996 = vmul.f32 %v932, %v900
      %v997 = vmul.f32 %v933, %v901
      %v998 = vmul.f32 %v934, %v902
      %v999 = vmul.f32 %v935, %v903
      %v1000 = vmul.f32 %v936, %v904
      %v1001 = vmul.f32 %v937, %v905
      %v1002 = vmul.f32 %v938, %v906
      %v1003 = vmul.f32 %v939, %v907
      %v1004 = vmul.f32 %v940, %v908
      %v1005 = vmul.f32 %v941, %v909
      %v1006 = vmul.f32 %v942, %v910
      %v1007 = vmul.f32 %v943, %v911
      %v1008 = vmul.f32 %v944, %v912
      %v1009 = vmul.f32 %v945, %v913
      %v1010 = vmul.f32 %v946, %v914
      %v1011 = vmul.f32 %v947, %v915
      %v1012 = vmul.f32 %v948, %v916
      %v1013 = vmul.f32 %v949, %v917
      %v1014 = vmul.f32 %v950, %v918
      %v1015 = vmul.f32 %v951, %v919
      %v1016 = vmul.f32 %v952, %v920
      %v1017 = vmul.f32 %v953, %v921
      %v1018 = vmul.f32 %v954, %v922
      %v1019 = vmul.f32 %v955, %v923
      %v1020 = vmul.f32 %v956, %v924
      %v1021 = vmul.f32 %v957, %v925
      %v1022 = vmul.f32 %v958, %v926
      %v1023 = vadd.f32 %v927, 1e-12
      %v1024 = vadd.f32 %v928, 1e-12
      %v1025 = vadd.f32 %v929, 1e-12
      %v1026 = vadd.f32 %v930, 1e-12
      %v1027 = vadd.f32 %v931, 1e-12
      %v1028 = vadd.f32 %v932, 1e-12
      %v1029 = vadd.f32 %v933, 1e-12
      %v1030 = vadd.f32 %v934, 1e-12
      %v1031 = vadd.f32 %v935, 1e-12
      %v1032 = vadd.f32 %v936, 1e-12
      %v1033 = vadd.f32 %v937, 1e-12
      %v1034 = vadd.f32 %v938, 1e-12
      %v1035 = vadd.f32 %v939, 1e-12
      %v1036 = vadd.f32 %v940, 1e-12
      %v1037 = vadd.f32 %v941, 1e-12
      %v1038 = vadd.f32 %v942, 1e-12
      %v1039 = vadd.f32 %v943, 1e-12
      %v1040 = vadd.f32 %v944, 1e-12
      %v1041 = vadd.f32 %v945, 1e-12
      %v1042 = vadd.f32 %v946, 1e-12
      %v1043 = vadd.f32 %v947, 1e-12
      %v1044 = vadd.f32 %v948, 1e-12
      %v1045 = vadd.f32 %v949, 1e-12
      %v1046 = vadd.f32 %v950, 1e-12
      %v1047 = vadd.f32 %v951, 1e-12
      %v1048 = vadd.f32 %v952, 1e-12
      %v1049 = vadd.f32 %v953, 1e-12
      %v1050 = vadd.f32 %v954, 1e-12
      %v1051 = vadd.f32 %v955, 1e-12
      %v1052 = vadd.f32 %v956, 1e-12
      %v1053 = vadd.f32 %v957, 1e-12
      %v1054 = vadd.f32 %v958, 1e-12
      %v1055 = vrcp.pop %v1023
      %v1056 = vmul.f32 %v991, %v1055
      %v1057 = vrcp.pop %v1024
      %v1058 = vmul.f32 %v992, %v1057
      %v1059 = vrcp.pop %v1025
      %v1060 = vmul.f32 %v993, %v1059
      %v1061 = vrcp.pop %v1026
      %v1062 = vmul.f32 %v994, %v1061
      %v1063 = vrcp.pop %v1027
      %v1064 = vmul.f32 %v995, %v1063
      %v1065 = vrcp.pop %v1028
      %v1066 = vmul.f32 %v996, %v1065
      %v1067 = vrcp.pop %v1029
      %v1068 = vmul.f32 %v997, %v1067
      %v1069 = vrcp.pop %v1030
      %v1070 = vmul.f32 %v998, %v1069
      %v1071 = vrcp.pop %v1031
      %v1072 = vmul.f32 %v999, %v1071
      %v1073 = vrcp.pop %v1032
      %v1074 = vmul.f32 %v1000, %v1073
      %v1075 = vrcp.pop %v1033
      %v1076 = vmul.f32 %v1001, %v1075
      %v1077 = vrcp.pop %v1034
      %v1078 = vmul.f32 %v1002, %v1077
      %v1079 = vrcp.pop %v1035
      %v1080 = vmul.f32 %v1003, %v1079
      %v1081 = vrcp.pop %v1036
      %v1082 = vmul.f32 %v1004, %v1081
      %v1083 = vrcp.pop %v1037
      %v1084 = vmul.f32 %v1005, %v1083
      %v1085 = vrcp.pop %v1038
      %v1086 = vmul.f32 %v1006, %v1085
      %v1087 = vrcp.pop %v1039
      %v1088 = vmul.f32 %v1007, %v1087
      %v1089 = vrcp.pop %v1040
      %v1090 = vmul.f32 %v1008, %v1089
      %v1091 = vrcp.pop %v1041
      %v1092 = vmul.f32 %v1009, %v1091
      %v1093 = vrcp.pop %v1042
      %v1094 = vmul.f32 %v1010, %v1093
      %v1095 = vrcp.pop %v1043
      %v1096 = vmul.f32 %v1011, %v1095
      %v1097 = vrcp.pop %v1044
      %v1098 = vmul.f32 %v1012, %v1097
      %v1099 = vrcp.pop %v1045
      %v1100 = vmul.f32 %v1013, %v1099
      %v1101 = vrcp.pop %v1046
      %v1102 = vmul.f32 %v1014, %v1101
      %v1103 = vrcp.pop %v1047
      %v1104 = vmul.f32 %v1015, %v1103
      %v1105 = vrcp.pop %v1048
      %v1106 = vmul.f32 %v1016, %v1105
      %v1107 = vrcp.pop %v1049
      %v1108 = vmul.f32 %v1017, %v1107
      %v1109 = vrcp.pop %v1050
      %v1110 = vmul.f32 %v1018, %v1109
      %v1111 = vrcp.pop %v1051
      %v1112 = vmul.f32 %v1019, %v1111
      %v1113 = vrcp.pop %v1052
      %v1114 = vmul.f32 %v1020, %v1113
      %v1115 = vrcp.pop %v1053
      %v1116 = vmul.f32 %v1021, %v1115
      %v1117 = vrcp.pop %v1054
      %v1118 = vmul.f32 %v1022, %v1117
      %v1119 = vsel %vm959, %v1056, 0.0
      %v1120 = vsel %vm960, %v1058, 0.0
      %v1121 = vsel %vm961, %v1060, 0.0
      %v1122 = vsel %vm962, %v1062, 0.0
      %v1123 = vsel %vm963, %v1064, 0.0
      %v1124 = vsel %vm964, %v1066, 0.0
      %v1125 = vsel %vm965, %v1068, 0.0
      %v1126 = vsel %vm966, %v1070, 0.0
      %v1127 = vsel %vm967, %v1072, 0.0
      %v1128 = vsel %vm968, %v1074, 0.0
      %v1129 = vsel %vm969, %v1076, 0.0
      %v1130 = vsel %vm970, %v1078, 0.0
      %v1131 = vsel %vm971, %v1080, 0.0
      %v1132 = vsel %vm972, %v1082, 0.0
      %v1133 = vsel %vm973, %v1084, 0.0
      %v1134 = vsel %vm974, %v1086, 0.0
      %v1135 = vsel %vm975, %v1088, 0.0
      %v1136 = vsel %vm976, %v1090, 0.0
      %v1137 = vsel %vm977, %v1092, 0.0
      %v1138 = vsel %vm978, %v1094, 0.0
      %v1139 = vsel %vm979, %v1096, 0.0
      %v1140 = vsel %vm980, %v1098, 0.0
      %v1141 = vsel %vm981, %v1100, 0.0
      %v1142 = vsel %vm982, %v1102, 0.0
      %v1143 = vsel %vm983, %v1104, 0.0
      %v1144 = vsel %vm984, %v1106, 0.0
      %v1145 = vsel %vm985, %v1108, 0.0
      %v1146 = vsel %vm986, %v1110, 0.0
      %v1147 = vsel %vm987, %v1112, 0.0
      %v1148 = vsel %vm988, %v1114, 0.0
      %v1149 = vsel %vm989, %v1116, 0.0
      %v1150 = vsel %vm990, %v1118, 0.0
      %v1151 = vsel %vm574, %v1119, 0.0
      %1152 = vadd.xlane.f32.xlu0 %v1151
      %v1153 = vpop.xlane.xlu0 %1152
      %v1154 = vsel %vm574, %v1120, 0.0
      %1155 = vadd.xlane.f32.xlu0 %v1154
      %v1156 = vpop.xlane.xlu0 %1155
      %v1157 = vsel %vm574, %v1121, 0.0
      %1158 = vadd.xlane.f32.xlu0 %v1157
      %v1159 = vpop.xlane.xlu0 %1158
      %v1160 = vsel %vm574, %v1122, 0.0
      %1161 = vadd.xlane.f32.xlu0 %v1160
      %v1162 = vpop.xlane.xlu0 %1161
      %v1163 = vsel %vm574, %v1123, 0.0
      %1164 = vadd.xlane.f32.xlu0 %v1163
      %v1165 = vpop.xlane.xlu0 %1164
      %v1166 = vsel %vm574, %v1124, 0.0
      %1167 = vadd.xlane.f32.xlu0 %v1166
      %v1168 = vpop.xlane.xlu0 %1167
      %v1169 = vsel %vm574, %v1125, 0.0
      %1170 = vadd.xlane.f32.xlu0 %v1169
      %v1171 = vpop.xlane.xlu0 %1170
      %v1172 = vsel %vm574, %v1126, 0.0
      %1173 = vadd.xlane.f32.xlu0 %v1172
      %v1174 = vpop.xlane.xlu0 %1173
      %v1175 = vsel %vm574, %v1127, 0.0
      %1176 = vadd.xlane.f32.xlu0 %v1175
      %v1177 = vpop.xlane.xlu0 %1176
      %v1178 = vsel %vm574, %v1128, 0.0
      %1179 = vadd.xlane.f32.xlu0 %v1178
      %v1180 = vpop.xlane.xlu0 %1179
      %v1181 = vsel %vm574, %v1129, 0.0
      %1182 = vadd.xlane.f32.xlu0 %v1181
      %v1183 = vpop.xlane.xlu0 %1182
      %v1184 = vsel %vm574, %v1130, 0.0
      %1185 = vadd.xlane.f32.xlu0 %v1184
      %v1186 = vpop.xlane.xlu0 %1185
      %v1187 = vsel %vm574, %v1131, 0.0
      %1188 = vadd.xlane.f32.xlu0 %v1187
      %v1189 = vpop.xlane.xlu0 %1188
      %v1190 = vsel %vm574, %v1132, 0.0
      %1191 = vadd.xlane.f32.xlu0 %v1190
      %v1192 = vpop.xlane.xlu0 %1191
      %v1193 = vsel %vm574, %v1133, 0.0
      %1194 = vadd.xlane.f32.xlu0 %v1193
      %v1195 = vpop.xlane.xlu0 %1194
      %v1196 = vsel %vm574, %v1134, 0.0
      %1197 = vadd.xlane.f32.xlu0 %v1196
      %v1198 = vpop.xlane.xlu0 %1197
      %v1199 = vsel %vm574, %v1135, 0.0
      %1200 = vadd.xlane.f32.xlu0 %v1199
      %v1201 = vpop.xlane.xlu0 %1200
      %v1202 = vsel %vm574, %v1136, 0.0
      %1203 = vadd.xlane.f32.xlu0 %v1202
      %v1204 = vpop.xlane.xlu0 %1203
      %v1205 = vsel %vm574, %v1137, 0.0
      %1206 = vadd.xlane.f32.xlu0 %v1205
      %v1207 = vpop.xlane.xlu0 %1206
      %v1208 = vsel %vm574, %v1138, 0.0
      %1209 = vadd.xlane.f32.xlu0 %v1208
      %v1210 = vpop.xlane.xlu0 %1209
      %v1211 = vsel %vm574, %v1139, 0.0
      %1212 = vadd.xlane.f32.xlu0 %v1211
      %v1213 = vpop.xlane.xlu0 %1212
      %v1214 = vsel %vm574, %v1140, 0.0
      %1215 = vadd.xlane.f32.xlu0 %v1214
      %v1216 = vpop.xlane.xlu0 %1215
      %v1217 = vsel %vm574, %v1141, 0.0
      %1218 = vadd.xlane.f32.xlu0 %v1217
      %v1219 = vpop.xlane.xlu0 %1218
      %v1220 = vsel %vm574, %v1142, 0.0
      %1221 = vadd.xlane.f32.xlu0 %v1220
      %v1222 = vpop.xlane.xlu0 %1221
      %v1223 = vsel %vm574, %v1143, 0.0
      %1224 = vadd.xlane.f32.xlu0 %v1223
      %v1225 = vpop.xlane.xlu0 %1224
      %v1226 = vsel %vm574, %v1144, 0.0
      %1227 = vadd.xlane.f32.xlu0 %v1226
      %v1228 = vpop.xlane.xlu0 %1227
      %v1229 = vsel %vm574, %v1145, 0.0
      %1230 = vadd.xlane.f32.xlu0 %v1229
      %v1231 = vpop.xlane.xlu0 %1230
      %v1232 = vsel %vm574, %v1146, 0.0
      %1233 = vadd.xlane.f32.xlu0 %v1232
      %v1234 = vpop.xlane.xlu0 %1233
      %v1235 = vsel %vm574, %v1147, 0.0
      %1236 = vadd.xlane.f32.xlu0 %v1235
      %v1237 = vpop.xlane.xlu0 %1236
      %v1238 = vsel %vm574, %v1148, 0.0
      %1239 = vadd.xlane.f32.xlu0 %v1238
      %v1240 = vpop.xlane.xlu0 %1239
      %v1241 = vsel %vm574, %v1149, 0.0
      %1242 = vadd.xlane.f32.xlu0 %v1241
      %v1243 = vpop.xlane.xlu0 %1242
      %v1244 = vsel %vm574, %v1150, 0.0
      %1245 = vadd.xlane.f32.xlu0 %v1244
      %v1246 = vpop.xlane.xlu0 %1245
      %v1247 = vmax.f32 %v1153, 1e-12
      %v1248 = vmax.f32 %v1156, 1e-12
      %v1249 = vmax.f32 %v1159, 1e-12
      %v1250 = vmax.f32 %v1162, 1e-12
      %v1251 = vmax.f32 %v1165, 1e-12
      %v1252 = vmax.f32 %v1168, 1e-12
      %v1253 = vmax.f32 %v1171, 1e-12
      %v1254 = vmax.f32 %v1174, 1e-12
      %v1255 = vmax.f32 %v1177, 1e-12
      %v1256 = vmax.f32 %v1180, 1e-12
      %v1257 = vmax.f32 %v1183, 1e-12
      %v1258 = vmax.f32 %v1186, 1e-12
      %v1259 = vmax.f32 %v1189, 1e-12
      %v1260 = vmax.f32 %v1192, 1e-12
      %v1261 = vmax.f32 %v1195, 1e-12
      %v1262 = vmax.f32 %v1198, 1e-12
      %v1263 = vmax.f32 %v1201, 1e-12
      %v1264 = vmax.f32 %v1204, 1e-12
      %v1265 = vmax.f32 %v1207, 1e-12
      %v1266 = vmax.f32 %v1210, 1e-12
      %v1267 = vmax.f32 %v1213, 1e-12
      %v1268 = vmax.f32 %v1216, 1e-12
      %v1269 = vmax.f32 %v1219, 1e-12
      %v1270 = vmax.f32 %v1222, 1e-12
      %v1271 = vmax.f32 %v1225, 1e-12
      %v1272 = vmax.f32 %v1228, 1e-12
      %v1273 = vmax.f32 %v1231, 1e-12
      %v1274 = vmax.f32 %v1234, 1e-12
      %v1275 = vmax.f32 %v1237, 1e-12
      %v1276 = vmax.f32 %v1240, 1e-12
      %v1277 = vmax.f32 %v1243, 1e-12
      %v1278 = vmax.f32 %v1246, 1e-12
      %v1279 = vrcp.pop %v1247
      %v1280 = vrcp.pop %v1248
      %v1281 = vrcp.pop %v1249
      %v1282 = vrcp.pop %v1250
      %v1283 = vrcp.pop %v1251
      %v1284 = vrcp.pop %v1252
      %v1285 = vrcp.pop %v1253
      %v1286 = vrcp.pop %v1254
      %v1287 = vrcp.pop %v1255
      %v1288 = vrcp.pop %v1256
      %v1289 = vrcp.pop %v1257
      %v1290 = vrcp.pop %v1258
      %v1291 = vrcp.pop %v1259
      %v1292 = vrcp.pop %v1260
      %v1293 = vrcp.pop %v1261
      %v1294 = vrcp.pop %v1262
      %v1295 = vrcp.pop %v1263
      %v1296 = vrcp.pop %v1264
      %v1297 = vrcp.pop %v1265
      %v1298 = vrcp.pop %v1266
      %v1299 = vrcp.pop %v1267
      %v1300 = vrcp.pop %v1268
      %v1301 = vrcp.pop %v1269
      %v1302 = vrcp.pop %v1270
      %v1303 = vrcp.pop %v1271
      %v1304 = vrcp.pop %v1272
      %v1305 = vrcp.pop %v1273
      %v1306 = vrcp.pop %v1274
      %v1307 = vrcp.pop %v1275
      %v1308 = vrcp.pop %v1276
      %v1309 = vrcp.pop %v1277
      %v1310 = vrcp.pop %v1278
      %v1311 = vmul.f32 %v1119, %v1279
      %v1312 = vmul.f32 %v1120, %v1280
      %v1313 = vmul.f32 %v1121, %v1281
      %v1314 = vmul.f32 %v1122, %v1282
      %v1315 = vmul.f32 %v1123, %v1283
      %v1316 = vmul.f32 %v1124, %v1284
      %v1317 = vmul.f32 %v1125, %v1285
      %v1318 = vmul.f32 %v1126, %v1286
      %v1319 = vmul.f32 %v1127, %v1287
      %v1320 = vmul.f32 %v1128, %v1288
      %v1321 = vmul.f32 %v1129, %v1289
      %v1322 = vmul.f32 %v1130, %v1290
      %v1323 = vmul.f32 %v1131, %v1291
      %v1324 = vmul.f32 %v1132, %v1292
      %v1325 = vmul.f32 %v1133, %v1293
      %v1326 = vmul.f32 %v1134, %v1294
      %v1327 = vmul.f32 %v1135, %v1295
      %v1328 = vmul.f32 %v1136, %v1296
      %v1329 = vmul.f32 %v1137, %v1297
      %v1330 = vmul.f32 %v1138, %v1298
      %v1331 = vmul.f32 %v1139, %v1299
      %v1332 = vmul.f32 %v1140, %v1300
      %v1333 = vmul.f32 %v1141, %v1301
      %v1334 = vmul.f32 %v1142, %v1302
      %v1335 = vmul.f32 %v1143, %v1303
      %v1336 = vmul.f32 %v1144, %v1304
      %v1337 = vmul.f32 %v1145, %v1305
      %v1338 = vmul.f32 %v1146, %v1306
      %v1339 = vmul.f32 %v1147, %v1307
      %v1340 = vmul.f32 %v1148, %v1308
      %v1341 = vmul.f32 %v1149, %v1309
      %v1342 = vmul.f32 %v1150, %v1310
      %v1344 = vsel %vm574, %v1311, 0
      %v1347 = vsel %vm574, %v1312, 0
      %v1350 = vsel %vm574, %v1313, 0
      %v1353 = vsel %vm574, %v1314, 0
      %v1356 = vsel %vm574, %v1315, 0
      %v1359 = vsel %vm574, %v1316, 0
      %v1362 = vsel %vm574, %v1317, 0
      %v1365 = vsel %vm574, %v1318, 0
      %v1368 = vsel %vm574, %v1319, 0
      %v1371 = vsel %vm574, %v1320, 0
      %v1374 = vsel %vm574, %v1321, 0
      %v1377 = vsel %vm574, %v1322, 0
      %v1380 = vsel %vm574, %v1323, 0
      %v1383 = vsel %vm574, %v1324, 0
      %v1386 = vsel %vm574, %v1325, 0
      %v1389 = vsel %vm574, %v1326, 0
      %v1392 = vsel %vm574, %v1327, 0
      %v1395 = vsel %vm574, %v1328, 0
      %v1398 = vsel %vm574, %v1329, 0
      %v1401 = vsel %vm574, %v1330, 0
      %v1404 = vsel %vm574, %v1331, 0
      %v1407 = vsel %vm574, %v1332, 0
      %v1410 = vsel %vm574, %v1333, 0
      %v1413 = vsel %vm574, %v1334, 0
      %v1416 = vsel %vm574, %v1335, 0
      %v1419 = vsel %vm574, %v1336, 0
      %v1422 = vsel %vm574, %v1337, 0
      %v1425 = vsel %vm574, %v1338, 0
      %v1428 = vsel %vm574, %v1339, 0
      %v1431 = vsel %vm574, %v1340, 0
      %v1434 = vsel %vm574, %v1341, 0
      %v1437 = vsel %vm574, %v1342, 0
      %1439 = vmatprep.subr.mxu0 0.0
      %1440 = vmatpush1.msra.mxu0 0.0
      %1441 = vmatprep.subr.mxu0 0.0
      %1442 = vmatpush1.msra.mxu0 0.0
      %1443 = vmatprep.subr.mxu0 0.0
      %1444 = vmatpush1.msra.mxu0 0.0
      %1445 = vmatprep.subr.mxu0 0.0
      %1446 = vmatpush1.msra.mxu0 0.0
      %1447 = vmatprep.subr.mxu0 0.0
      %1448 = vmatpush1.msra.mxu0 0.0
      %1449 = vmatprep.subr.mxu0 0.0
      %1450 = vmatpush1.msra.mxu0 0.0
      %1451 = vmatprep.subr.mxu0 0.0
      %1452 = vmatpush1.msra.mxu0 0.0
      %1453 = vmatprep.subr.mxu0 0.0
      %1454 = vmatpush1.msra.mxu0 0.0
      %1455 = vmatprep.subr.mxu0 0.0
      %1456 = vmatpush1.msra.mxu0 %v227
      %1457 = vmatprep.subr.mxu0 0.0
      %1458 = vmatpush1.msra.mxu0 %v226
      %1459 = vmatprep.subr.mxu0 0.0
      %1460 = vmatpush1.msra.mxu0 %v225
      %1461 = vmatprep.subr.mxu0 0.0
      %1462 = vmatpush1.msra.mxu0 %v224
      %1463 = vmatprep.subr.mxu0 0.0
      %1464 = vmatpush1.msra.mxu0 %v223
      %1465 = vmatprep.subr.mxu0 0.0
      %1466 = vmatpush1.msra.mxu0 %v222
      %1467 = vmatprep.subr.mxu0 0.0
      %1468 = vmatpush1.msra.mxu0 %v221
      %1469 = vmatprep.subr.mxu0 0.0
      %1470 = vmatpush1.msra.mxu0 %v220
      %1471 = vmatprep.subr.mxu0 0.0
      %1472 = vmatpush2.msra.mxu0 0.0
      %1473 = vmatprep.subr.mxu0 0.0
      %1474 = vmatpush2.msra.mxu0 0.0
      %1475 = vmatprep.subr.mxu0 0.0
      %1476 = vmatpush2.msra.mxu0 0.0
      %1477 = vmatprep.subr.mxu0 0.0
      %1478 = vmatpush2.msra.mxu0 0.0
      %1479 = vmatprep.subr.mxu0 0.0
      %1480 = vmatpush2.msra.mxu0 0.0
      %1481 = vmatprep.subr.mxu0 0.0
      %1482 = vmatpush2.msra.mxu0 0.0
      %1483 = vmatprep.subr.mxu0 0.0
      %1484 = vmatpush2.msra.mxu0 0.0
      %1485 = vmatprep.subr.mxu0 0.0
      %1486 = vmatpush2.msra.mxu0 0.0
      %1487 = vmatprep.subr.mxu0 0.0
      %1488 = vmatpush2.msra.mxu0 0.0
      %1489 = vmatprep.subr.mxu0 0.0
      %1490 = vmatpush2.msra.mxu0 0.0
      %1491 = vmatprep.subr.mxu0 0.0
      %1492 = vmatpush2.msra.mxu0 0.0
      %1493 = vmatprep.subr.mxu0 0.0
      %1494 = vmatpush2.msra.mxu0 0.0
      %1495 = vmatprep.subr.mxu0 0.0
      %1496 = vmatpush2.msra.mxu0 0.0
      %1497 = vmatprep.subr.mxu0 0.0
      %1498 = vmatpush2.msra.mxu0 0.0
      %1499 = vmatprep.subr.mxu0 0.0
      %1500 = vmatpush2.msra.mxu0 0.0
      %1501 = vmatprep.subr.mxu0 0.0
      %1502 = vmatpush2.msra.mxu0 0.0
      %1503 = vmatprep.mubr.f32.mxu0 0.0
      %1504 = vmatmul.mubr.f32.gmra.mxu0 %v1344
      %v1505 = vpop.f32.mrf.mxu0
      %v1506 = vadd.f32 0.0, %v1505
      %v1507 = vpop.f32.mrf.mxu0
      %1508 = vmatprep.mubr.f32.mxu0 0.0
      %1509 = vmatmul.mubr.f32.gmra.mxu0 %v1347
      %v1510 = vpop.f32.mrf.mxu0
      %v1511 = vadd.f32 0.0, %v1510
      %v1512 = vpop.f32.mrf.mxu0
      %1513 = vmatprep.mubr.f32.mxu0 0.0
      %1514 = vmatmul.mubr.f32.gmra.mxu0 %v1350
      %v1515 = vpop.f32.mrf.mxu0
      %v1516 = vadd.f32 0.0, %v1515
      %v1517 = vpop.f32.mrf.mxu0
      %1518 = vmatprep.mubr.f32.mxu0 0.0
      %1519 = vmatmul.mubr.f32.gmra.mxu0 %v1353
      %v1520 = vpop.f32.mrf.mxu0
      %v1521 = vadd.f32 0.0, %v1520
      %v1522 = vpop.f32.mrf.mxu0
      %1523 = vmatprep.mubr.f32.mxu0 0.0
      %1524 = vmatmul.mubr.f32.gmra.mxu0 %v1356
      %v1525 = vpop.f32.mrf.mxu0
      %v1526 = vadd.f32 0.0, %v1525
      %v1527 = vpop.f32.mrf.mxu0
      %1528 = vmatprep.mubr.f32.mxu0 0.0
      %1529 = vmatmul.mubr.f32.gmra.mxu0 %v1359
      %v1530 = vpop.f32.mrf.mxu0
      %v1531 = vadd.f32 0.0, %v1530
      %v1532 = vpop.f32.mrf.mxu0
      %1533 = vmatprep.mubr.f32.mxu0 0.0
      %1534 = vmatmul.mubr.f32.gmra.mxu0 %v1362
      %v1535 = vpop.f32.mrf.mxu0
      %v1536 = vadd.f32 0.0, %v1535
      %v1537 = vpop.f32.mrf.mxu0
      %1538 = vmatprep.mubr.f32.mxu0 0.0
      %1539 = vmatmul.mubr.f32.gmra.mxu0 %v1365
      %v1540 = vpop.f32.mrf.mxu0
      %v1541 = vadd.f32 0.0, %v1540
      %v1542 = vpop.f32.mrf.mxu0
      %1543 = vmatprep.mubr.f32.mxu0 0.0
      %1544 = vmatmul.mubr.f32.gmra.mxu0 %v1368
      %v1545 = vpop.f32.mrf.mxu0
      %v1546 = vadd.f32 0.0, %v1545
      %v1547 = vpop.f32.mrf.mxu0
      %1548 = vmatprep.mubr.f32.mxu0 0.0
      %1549 = vmatmul.mubr.f32.gmra.mxu0 %v1371
      %v1550 = vpop.f32.mrf.mxu0
      %v1551 = vadd.f32 0.0, %v1550
      %v1552 = vpop.f32.mrf.mxu0
      %1553 = vmatprep.mubr.f32.mxu0 0.0
      %1554 = vmatmul.mubr.f32.gmra.mxu0 %v1374
      %v1555 = vpop.f32.mrf.mxu0
      %v1556 = vadd.f32 0.0, %v1555
      %v1557 = vpop.f32.mrf.mxu0
      %1558 = vmatprep.mubr.f32.mxu0 0.0
      %1559 = vmatmul.mubr.f32.gmra.mxu0 %v1377
      %v1560 = vpop.f32.mrf.mxu0
      %v1561 = vadd.f32 0.0, %v1560
      %v1562 = vpop.f32.mrf.mxu0
      %1563 = vmatprep.mubr.f32.mxu0 0.0
      %1564 = vmatmul.mubr.f32.gmra.mxu0 %v1380
      %v1565 = vpop.f32.mrf.mxu0
      %v1566 = vadd.f32 0.0, %v1565
      %v1567 = vpop.f32.mrf.mxu0
      %1568 = vmatprep.mubr.f32.mxu0 0.0
      %1569 = vmatmul.mubr.f32.gmra.mxu0 %v1383
      %v1570 = vpop.f32.mrf.mxu0
      %v1571 = vadd.f32 0.0, %v1570
      %v1572 = vpop.f32.mrf.mxu0
      %1573 = vmatprep.mubr.f32.mxu0 0.0
      %1574 = vmatmul.mubr.f32.gmra.mxu0 %v1386
      %v1575 = vpop.f32.mrf.mxu0
      %v1576 = vadd.f32 0.0, %v1575
      %v1577 = vpop.f32.mrf.mxu0
      %1578 = vmatprep.mubr.f32.mxu0 0.0
      %1579 = vmatmul.mubr.f32.gmra.mxu0 %v1389
      %v1580 = vpop.f32.mrf.mxu0
      %v1581 = vadd.f32 0.0, %v1580
      %v1582 = vpop.f32.mrf.mxu0
      %1583 = vmatprep.mubr.f32.mxu0 0.0
      %1584 = vmatmul.mubr.f32.gmra.mxu0 %v1392
      %v1585 = vpop.f32.mrf.mxu0
      %v1586 = vadd.f32 0.0, %v1585
      %v1587 = vpop.f32.mrf.mxu0
      %1588 = vmatprep.mubr.f32.mxu0 0.0
      %1589 = vmatmul.mubr.f32.gmra.mxu0 %v1395
      %v1590 = vpop.f32.mrf.mxu0
      %v1591 = vadd.f32 0.0, %v1590
      %v1592 = vpop.f32.mrf.mxu0
      %1593 = vmatprep.mubr.f32.mxu0 0.0
      %1594 = vmatmul.mubr.f32.gmra.mxu0 %v1398
      %v1595 = vpop.f32.mrf.mxu0
      %v1596 = vadd.f32 0.0, %v1595
      %v1597 = vpop.f32.mrf.mxu0
      %1598 = vmatprep.mubr.f32.mxu0 0.0
      %1599 = vmatmul.mubr.f32.gmra.mxu0 %v1401
      %v1600 = vpop.f32.mrf.mxu0
      %v1601 = vadd.f32 0.0, %v1600
      %v1602 = vpop.f32.mrf.mxu0
      %1603 = vmatprep.mubr.f32.mxu0 0.0
      %1604 = vmatmul.mubr.f32.gmra.mxu0 %v1404
      %v1605 = vpop.f32.mrf.mxu0
      %v1606 = vadd.f32 0.0, %v1605
      %v1607 = vpop.f32.mrf.mxu0
      %1608 = vmatprep.mubr.f32.mxu0 0.0
      %1609 = vmatmul.mubr.f32.gmra.mxu0 %v1407
      %v1610 = vpop.f32.mrf.mxu0
      %v1611 = vadd.f32 0.0, %v1610
      %v1612 = vpop.f32.mrf.mxu0
      %1613 = vmatprep.mubr.f32.mxu0 0.0
      %1614 = vmatmul.mubr.f32.gmra.mxu0 %v1410
      %v1615 = vpop.f32.mrf.mxu0
      %v1616 = vadd.f32 0.0, %v1615
      %v1617 = vpop.f32.mrf.mxu0
      %1618 = vmatprep.mubr.f32.mxu0 0.0
      %1619 = vmatmul.mubr.f32.gmra.mxu0 %v1413
      %v1620 = vpop.f32.mrf.mxu0
      %v1621 = vadd.f32 0.0, %v1620
      %v1622 = vpop.f32.mrf.mxu0
      %1623 = vmatprep.mubr.f32.mxu0 0.0
      %1624 = vmatmul.mubr.f32.gmra.mxu0 %v1416
      %v1625 = vpop.f32.mrf.mxu0
      %v1626 = vadd.f32 0.0, %v1625
      %v1627 = vpop.f32.mrf.mxu0
      %1628 = vmatprep.mubr.f32.mxu0 0.0
      %1629 = vmatmul.mubr.f32.gmra.mxu0 %v1419
      %v1630 = vpop.f32.mrf.mxu0
      %v1631 = vadd.f32 0.0, %v1630
      %v1632 = vpop.f32.mrf.mxu0
      %1633 = vmatprep.mubr.f32.mxu0 0.0
      %1634 = vmatmul.mubr.f32.gmra.mxu0 %v1422
      %v1635 = vpop.f32.mrf.mxu0
      %v1636 = vadd.f32 0.0, %v1635
      %v1637 = vpop.f32.mrf.mxu0
      %1638 = vmatprep.mubr.f32.mxu0 0.0
      %1639 = vmatmul.mubr.f32.gmra.mxu0 %v1425
      %v1640 = vpop.f32.mrf.mxu0
      %v1641 = vadd.f32 0.0, %v1640
      %v1642 = vpop.f32.mrf.mxu0
      %1643 = vmatprep.mubr.f32.mxu0 0.0
      %1644 = vmatmul.mubr.f32.gmra.mxu0 %v1428
      %v1645 = vpop.f32.mrf.mxu0
      %v1646 = vadd.f32 0.0, %v1645
      %v1647 = vpop.f32.mrf.mxu0
      %1648 = vmatprep.mubr.f32.mxu0 0.0
      %1649 = vmatmul.mubr.f32.gmra.mxu0 %v1431
      %v1650 = vpop.f32.mrf.mxu0
      %v1651 = vadd.f32 0.0, %v1650
      %v1652 = vpop.f32.mrf.mxu0
      %1653 = vmatprep.mubr.f32.mxu0 0.0
      %1654 = vmatmul.mubr.f32.gmra.mxu0 %v1434
      %v1655 = vpop.f32.mrf.mxu0
      %v1656 = vadd.f32 0.0, %v1655
      %v1657 = vpop.f32.mrf.mxu0
      %1658 = vmatprep.mubr.f32.mxu0 0.0
      %1659 = vmatmul.mubr.f32.gmra.mxu0 %v1437
      %v1660 = vpop.f32.mrf.mxu0
      %v1661 = vadd.f32 0.0, %v1660
      %v1662 = vpop.f32.mrf.mxu0
      %1663 = vdwg.mxu0
      %1664 = vst.msk [vmem:[%s180] sm:$0xff] %vm228, %v1506
      %1665 = vst.msk [vmem:[%s180 + $0x8] sm:$0xff] %vm228, %v1511
      %1666 = vst.msk [vmem:[%s180 + $0x10] sm:$0xff] %vm228, %v1516
      %1667 = vst.msk [vmem:[%s180 + $0x18] sm:$0xff] %vm228, %v1521
      %1668 = vst.msk [vmem:[%s180 + $0x20] sm:$0xff] %vm228, %v1526
      %1669 = vst.msk [vmem:[%s180 + $0x28] sm:$0xff] %vm228, %v1531
      %1670 = vst.msk [vmem:[%s180 + $0x30] sm:$0xff] %vm228, %v1536
      %1671 = vst.msk [vmem:[%s180 + $0x38] sm:$0xff] %vm228, %v1541
      %1672 = vst.msk [vmem:[%s180 + $0x40] sm:$0xff] %vm228, %v1546
      %1673 = vst.msk [vmem:[%s180 + $0x48] sm:$0xff] %vm228, %v1551
      %1674 = vst.msk [vmem:[%s180 + $0x50] sm:$0xff] %vm228, %v1556
      %1675 = vst.msk [vmem:[%s180 + $0x58] sm:$0xff] %vm228, %v1561
      %1676 = vst.msk [vmem:[%s180 + $0x60] sm:$0xff] %vm228, %v1566
      %1677 = vst.msk [vmem:[%s180 + $0x68] sm:$0xff] %vm228, %v1571
      %1678 = vst.msk [vmem:[%s180 + $0x70] sm:$0xff] %vm228, %v1576
      %1679 = vst.msk [vmem:[%s180 + $0x78] sm:$0xff] %vm228, %v1581
      %1680 = vst.msk [vmem:[%s180 + $0x80] sm:$0xff] %vm228, %v1586
      %1681 = vst.msk [vmem:[%s180 + $0x88] sm:$0xff] %vm228, %v1591
      %1682 = vst.msk [vmem:[%s180 + $0x90] sm:$0xff] %vm228, %v1596
      %1683 = vst.msk [vmem:[%s180 + $0x98] sm:$0xff] %vm228, %v1601
      %1684 = vst.msk [vmem:[%s180 + $0xa0] sm:$0xff] %vm228, %v1606
      %1685 = vst.msk [vmem:[%s180 + $0xa8] sm:$0xff] %vm228, %v1611
      %1686 = vst.msk [vmem:[%s180 + $0xb0] sm:$0xff] %vm228, %v1616
      %1687 = vst.msk [vmem:[%s180 + $0xb8] sm:$0xff] %vm228, %v1621
      %1688 = vst.msk [vmem:[%s180 + $0xc0] sm:$0xff] %vm228, %v1626
      %1689 = vst.msk [vmem:[%s180 + $0xc8] sm:$0xff] %vm228, %v1631
      %1690 = vst.msk [vmem:[%s180 + $0xd0] sm:$0xff] %vm228, %v1636
      %1691 = vst.msk [vmem:[%s180 + $0xd8] sm:$0xff] %vm228, %v1641
      %1692 = vst.msk [vmem:[%s180 + $0xe0] sm:$0xff] %vm228, %v1646
      %1693 = vst.msk [vmem:[%s180 + $0xe8] sm:$0xff] %vm228, %v1651
      %1694 = vst.msk [vmem:[%s180 + $0xf0] sm:$0xff] %vm228, %v1656
      %1695 = vst.msk [vmem:[%s180 + $0xf8] sm:$0xff] %vm228, %v1661
      %1696 = vst.msk [vmem:[%s186] sm:$0xff] %vm574, %v1311
      %1697 = vst.msk [vmem:[%s186 + $0x8] sm:$0xff] %vm574, %v1312
      %1698 = vst.msk [vmem:[%s186 + $0x10] sm:$0xff] %vm574, %v1313
      %1699 = vst.msk [vmem:[%s186 + $0x18] sm:$0xff] %vm574, %v1314
      %1700 = vst.msk [vmem:[%s186 + $0x20] sm:$0xff] %vm574, %v1315
      %1701 = vst.msk [vmem:[%s186 + $0x28] sm:$0xff] %vm574, %v1316
      %1702 = vst.msk [vmem:[%s186 + $0x30] sm:$0xff] %vm574, %v1317
      %1703 = vst.msk [vmem:[%s186 + $0x38] sm:$0xff] %vm574, %v1318
      %1704 = vst.msk [vmem:[%s186 + $0x40] sm:$0xff] %vm574, %v1319
      %1705 = vst.msk [vmem:[%s186 + $0x48] sm:$0xff] %vm574, %v1320
      %1706 = vst.msk [vmem:[%s186 + $0x50] sm:$0xff] %vm574, %v1321
      %1707 = vst.msk [vmem:[%s186 + $0x58] sm:$0xff] %vm574, %v1322
      %1708 = vst.msk [vmem:[%s186 + $0x60] sm:$0xff] %vm574, %v1323
      %1709 = vst.msk [vmem:[%s186 + $0x68] sm:$0xff] %vm574, %v1324
      %1710 = vst.msk [vmem:[%s186 + $0x70] sm:$0xff] %vm574, %v1325
      %1711 = vst.msk [vmem:[%s186 + $0x78] sm:$0xff] %vm574, %v1326
      %1712 = vst.msk [vmem:[%s186 + $0x80] sm:$0xff] %vm574, %v1327
      %1713 = vst.msk [vmem:[%s186 + $0x88] sm:$0xff] %vm574, %v1328
      %1714 = vst.msk [vmem:[%s186 + $0x90] sm:$0xff] %vm574, %v1329
      %1715 = vst.msk [vmem:[%s186 + $0x98] sm:$0xff] %vm574, %v1330
      %1716 = vst.msk [vmem:[%s186 + $0xa0] sm:$0xff] %vm574, %v1331
      %1717 = vst.msk [vmem:[%s186 + $0xa8] sm:$0xff] %vm574, %v1332
      %1718 = vst.msk [vmem:[%s186 + $0xb0] sm:$0xff] %vm574, %v1333
      %1719 = vst.msk [vmem:[%s186 + $0xb8] sm:$0xff] %vm574, %v1334
      %1720 = vst.msk [vmem:[%s186 + $0xc0] sm:$0xff] %vm574, %v1335
      %1721 = vst.msk [vmem:[%s186 + $0xc8] sm:$0xff] %vm574, %v1336
      %1722 = vst.msk [vmem:[%s186 + $0xd0] sm:$0xff] %vm574, %v1337
      %1723 = vst.msk [vmem:[%s186 + $0xd8] sm:$0xff] %vm574, %v1338
      %1724 = vst.msk [vmem:[%s186 + $0xe0] sm:$0xff] %vm574, %v1339
      %1725 = vst.msk [vmem:[%s186 + $0xe8] sm:$0xff] %vm574, %v1340
      %1726 = vst.msk [vmem:[%s186 + $0xf0] sm:$0xff] %vm574, %v1341
      %1727 = vst.msk [vmem:[%s186 + $0xf8] sm:$0xff] %vm574, %v1342
      %s1728 = smul.u32 32, %s15
      %p1729 = scmp.lt.s32.totalorder %s1728, 63
      %s1730 = scalar_select %p1729, %s1728, 63
      %s1731 = smul.addr %s1730, 8
      %s1732 = scalar_lea.vmem %s2, %s1731
      %s1733 = smul.u32 32, %s15
      %p1734 = scmp.lt.s32.totalorder %s1733, 63
      %s1735 = scalar_select %p1734, %s1733, 63
      %s1736 = smul.addr %s1735, 8
      %s1737 = scalar_lea.vmem %s3, %s1736
      // Predicated region
      $region29: #{tpu_custom_call.1} parent=27 // pred_check
        %p1738 = pneg %p80
      $region30: #{tpu_custom_call.1} parent=27 // pred_check_branch
        %1740 = sbr.rel (%p1738) target = $region32
      $region31: #{tpu_custom_call.1} parent=27 // pred_region
        %s1741 = smul.u32 32, %s15
      $region32: #{tpu_custom_call.1} parent=27 // pred_fallthru
        _
      // Predicated region
      $region33: #{tpu_custom_call.1} parent=27 // pred_check
        %p1742 = pneg %p106
      $region34: #{tpu_custom_call.1} parent=27 // pred_check_branch
        %1744 = sbr.rel (%p1742) target = $region36
      $region35: #{tpu_custom_call.1} parent=27 // pred_region
        %s1745 = smul.u32 32, %s15
      $region36: #{tpu_custom_call.1} parent=27 // pred_fallthru
        _
    $region28: #{tpu_custom_call.1} parent=5 // pred_fallthru
      _
    %p1746 = scmp.le.s32.totalorder 2, %s10
    // Predicated region
    $region37: #{tpu_custom_call.1} parent=5 // pred_check
      %p1747 = pneg %p1746
    $region38: #{tpu_custom_call.1} parent=5 // pred_check_branch
      %1749 = sbr.rel (%p1747) target = $region40
    $region39: #{tpu_custom_call.1} parent=5 // pred_region
      %s1750 = ssub.s32 %s10, 2
      // Predicated region
      $region41: #{tpu_custom_call.1} parent=39 // pred_check
        %p1751 = pneg %p86
      $region42: #{tpu_custom_call.1} parent=39 // pred_check_branch
        %1753 = sbr.rel (%p1751) target = $region44
      $region43: #{tpu_custom_call.1} parent=39 // pred_region
        %s1754 = smul.u32 32, %s16
        %p1755 = scmp.lt.s32.totalorder %s1754, 63
        %s1756 = scalar_select %p1755, %s1754, 63
        %s1757 = smul.addr %s1756, 8
        %s1758 = scalar_lea.vmem %s2, %s1757
      $region44: #{tpu_custom_call.1} parent=39 // pred_fallthru
        _
      // Predicated region
      $region45: #{tpu_custom_call.1} parent=39 // pred_check
        %p1759 = pneg %p112
      $region46: #{tpu_custom_call.1} parent=39 // pred_check_branch
        %1761 = sbr.rel (%p1759) target = $region48
      $region47: #{tpu_custom_call.1} parent=39 // pred_region
        %s1762 = smul.u32 32, %s16
        %p1763 = scmp.lt.s32.totalorder %s1762, 63
        %s1764 = scalar_select %p1763, %s1762, 63
        %s1765 = smul.addr %s1764, 8
        %s1766 = scalar_lea.vmem %s3, %s1765
      $region48: #{tpu_custom_call.1} parent=39 // pred_fallthru
        _
    $region40: #{tpu_custom_call.1} parent=5 // pred_fallthru
      _
  $region6: #{tpu_custom_call.1} parent=0 // loop_footer
    %s14 = sadd.s32 1, %s10
  $region7: #{tpu_custom_call.1} parent=0 // loop_footer_branch
    %9 = sbr.rel target = $region3
  $region8: #{tpu_custom_call.1} parent=0 // loop_exit
    _

</llo_original>
